<compile_context>
chip_gen: v7x
topology: tpu7x:2x2x1
jax: 0.10.0
libtpu: 0.0.40
codegen_flags: <defaults>
</compile_context>

<pallas_src>
import jax
import jax.numpy as jnp
from jax import lax
from jax.experimental import pallas as pl
from jax.experimental.pallas import tpu as pltpu

EPS = 1e-5


def _fused_kernel(x_ref, w1_ref, g1_ref, w2_ref, g2_ref, b2_ref, o_ref, y1s_ref):
    # x_ref  : (C0, P)    input pixels, channels-first (x208 folded into w1)
    # w1_ref : (C1, C0)   conv1 weights (pre-scaled by the per-channel mult)
    # g1_ref : (C1, 1)    BN1 gamma
    # w2_ref : (TC2, C1)  conv2 weight tile for this grid step
    # g2_ref : (TC2, 1)   BN2 gamma tile;  b2_ref: (TC2, 1) BN2 beta tile
    # o_ref  : (TC2, P)   output tile
    # y1s_ref: (C1, P)    scratch: centered, BN1-scaled conv1 activations
    p = x_ref.shape[1]
    inv_p = 1.0 / p

    # Stage 1 (once per core): conv1 + BN1 statistics + center + scale.
    @pl.when(pl.program_id(1) == 0)
    def _():
        y1 = jnp.dot(w1_ref[...], x_ref[...],
                     preferred_element_type=jnp.float32)            # (C1, P)
        m1 = jnp.sum(y1, axis=1, keepdims=True) * inv_p             # (C1, 1)
        y1c = y1 - m1                                               # centered
        v1 = jnp.sum(y1c * y1c, axis=1, keepdims=True) * inv_p      # >= 0
        scale1 = g1_ref[...] * lax.rsqrt(v1 + EPS)                  # (C1, 1)
        # BN1 shift (beta1) is constant over P; it is removed exactly by the
        # centering below, so it is intentionally omitted.
        y1s_ref[...] = y1c * scale1

    # Stage 2 (every grid step): one C2 tile of conv2 + BN2.
    # y1s is exactly mean-centered per channel, and conv2 is linear, so y2c is
    # exactly mean-centered per output channel: no BN2 mean reduction needed.
    y2c = jnp.dot(w2_ref[...], y1s_ref[...],
                  preferred_element_type=jnp.float32)               # (TC2, P)
    v2 = jnp.sum(y2c * y2c, axis=1, keepdims=True) * inv_p          # >= 0
    scale2 = g2_ref[...] * lax.rsqrt(v2 + EPS)                      # (TC2, 1)
    o_ref[...] = y2c * scale2 + b2_ref[...]


def mul_conv_bn_conv_bn(x203, x208, w1, g1, b1, w2, g2, b2):
    """x203: (N, C0, H, W) NCHW; x208: (N, C0, 1, 1); w1: (C1, C0, 1, 1);
    w2: (C2, C1, 1, 1); g/b: (C,) batchnorm weight/bias.  Returns NCHW."""
    N, C0, H, W = x203.shape
    C1 = w1.shape[0]
    C2 = w2.shape[0]
    P = N * H * W

    w1m = w1.reshape(C1, C0)
    w2m = w2.reshape(C2, C1)
    if w1m.dtype != jnp.float32:
        w1m = w1m.astype(jnp.float32)
    if w2m.dtype != jnp.float32:
        w2m = w2m.astype(jnp.float32)

    if N == 1:
        # Fold the per-channel scale into conv1's weights (exact when the
        # scale is constant over P); NCHW -> (C0, P) is then a pure reshape.
        w1m = w1m * x208.reshape(1, C0)
        x = x203.reshape(C0, P)
    else:
        # General batch: per-sample scale must be applied to the activations.
        x = jnp.transpose(x208 * x203, (1, 0, 2, 3)).reshape(C0, P)

    # b1 is not passed to the kernel: the BN1 shift is constant over P and is
    # removed exactly by the in-kernel mean-centering before conv2.
    _ = b1

    # Pick a C2 tiling: (2 cores) x (tiles per core); tile rows must be a
    # multiple of 8 (sublane constraint).  For C2 = 816 -> 6 tiles of 136.
    n_tiles = 1
    for n in (6, 4, 2):
        if C2 % n == 0 and (C2 // n) % 8 == 0:
            n_tiles = n
            break
    cores = 2 if n_tiles % 2 == 0 else 1
    tpc = n_tiles // cores          # tiles per core
    tc2 = C2 // n_tiles             # rows per tile

    grid = (cores, tpc)
    in_specs = [
        pl.BlockSpec((C0, P), lambda i, j: (0, 0)),                 # x (resident)
        pl.BlockSpec((C1, C0), lambda i, j: (0, 0)),                # w1 (resident)
        pl.BlockSpec((C1, 1), lambda i, j: (0, 0)),                 # gamma1
        pl.BlockSpec((tc2, C1), lambda i, j: (i * tpc + j, 0)),     # w2 tile
        pl.BlockSpec((tc2, 1), lambda i, j: (i * tpc + j, 0)),      # gamma2 tile
        pl.BlockSpec((tc2, 1), lambda i, j: (i * tpc + j, 0)),      # beta2 tile
    ]
    out_specs = pl.BlockSpec((tc2, P), lambda i, j: (i * tpc + j, 0))

    out = pl.pallas_call(
        _fused_kernel,
        out_shape=jax.ShapeDtypeStruct((C2, P), jnp.float32),
        grid=grid,
        in_specs=in_specs,
        out_specs=out_specs,
        scratch_shapes=[pltpu.VMEM((C1, P), jnp.float32)],
        compiler_params=pltpu.CompilerParams(
            dimension_semantics=("parallel", "arbitrary")),
    )(x, w1m,
      g1.reshape(C1, 1).astype(jnp.float32),
      w2m,
      g2.reshape(C2, 1).astype(jnp.float32),
      b2.reshape(C2, 1).astype(jnp.float32))

    if N == 1:
        return out.reshape(1, C2, H, W)            # pure reshape back to NCHW
    return jnp.transpose(out.reshape(C2, N, H, W), (1, 0, 2, 3))


def _reference(x203, x208, w1, g1, b1, w2, g2, b2):
    """Pure-JAX reference (training-mode batchnorm), NCHW."""
    x = x208 * x203
    y1 = lax.conv_general_dilated(x, w1, (1, 1), "VALID",
                                  dimension_numbers=("NCHW", "OIHW", "NCHW"))
    m1 = jnp.mean(y1, axis=(0, 2, 3), keepdims=True)
    v1 = jnp.mean((y1 - m1) ** 2, axis=(0, 2, 3), keepdims=True)
    y1 = (y1 - m1) * lax.rsqrt(v1 + EPS) * g1[None, :, None, None] + b1[None, :, None, None]
    y2 = lax.conv_general_dilated(y1, w2, (1, 1), "VALID",
                                  dimension_numbers=("NCHW", "OIHW", "NCHW"))
    m2 = jnp.mean(y2, axis=(0, 2, 3), keepdims=True)
    v2 = jnp.mean((y2 - m2) ** 2, axis=(0, 2, 3), keepdims=True)
    return (y2 - m2) * lax.rsqrt(v2 + EPS) * g2[None, :, None, None] + b2[None, :, None, None]


if __name__ == "__main__":
    key = jax.random.PRNGKey(0)
    k = jax.random.split(key, 8)

    N, C0, H, W = 1, 576, 14, 14
    C1, C2 = 136, 816

    # inputs (deterministic)
    x203 = jax.random.normal(k[0], (N, C0, H, W), jnp.float32)
    x208 = jax.random.normal(k[1], (N, C0, 1, 1), jnp.float32)

    # parameters (deterministic)
    w1 = jax.random.normal(k[2], (C1, C0, 1, 1), jnp.float32) * 0.05
    w2 = jax.random.normal(k[3], (C2, C1, 1, 1), jnp.float32) * 0.05
    g1 = 1.0 + 0.1 * jax.random.normal(k[4], (C1,), jnp.float32)
    b1 = 0.1 * jax.random.normal(k[5], (C1,), jnp.float32)
    g2 = 1.0 + 0.1 * jax.random.normal(k[6], (C2,), jnp.float32)
    b2 = 0.1 * jax.random.normal(k[7], (C2,), jnp.float32)

    fused = jax.jit(mul_conv_bn_conv_bn)
    out = jax.block_until_ready(fused(x203, x208, w1, g1, b1, w2, g2, b2))

    ref = jax.block_until_ready(_reference(x203, x208, w1, g1, b1, w2, g2, b2))
    assert out.shape == (N, C2, H, W), out.shape
    assert jnp.allclose(out, ref, atol=1e-3, rtol=1e-3), float(
        jnp.max(jnp.abs(out - ref)))

    print("KERNEL_OK")
</pallas_src>

<mosaic_0001>
module attributes {stable_mosaic.version = 11 : i64} {
  func.func @_fused_kernel(%arg0: i32, %arg1: i32, %arg2: memref<576x196xf32, #tpu.memory_space<vmem>>, %arg3: memref<136x576xf32, #tpu.memory_space<vmem>>, %arg4: memref<136x1xf32, #tpu.memory_space<vmem>>, %arg5: memref<136x136xf32, #tpu.memory_space<vmem>>, %arg6: memref<136x1xf32, #tpu.memory_space<vmem>>, %arg7: memref<136x1xf32, #tpu.memory_space<vmem>>, %arg8: memref<136x196xf32, #tpu.memory_space<vmem>>, %arg9: memref<136x196xf32, #tpu.memory_space<vmem>>) attributes {dimension_semantics = [#tpu.dimension_semantics<parallel>, #tpu.dimension_semantics<arbitrary>], iteration_bounds = array<i64: 2, 3>, scalar_prefetch = 0 : i64, scratch_operands = 1 : i64, tpu.core_type = #tpu.core_type<tc>, window_params = [{pipeline_mode = #tpu.pipeline_mode<synchronous>, transform_indices = @transform_0, window_bounds = array<i64: 576, 196>}, {pipeline_mode = #tpu.pipeline_mode<synchronous>, transform_indices = @transform_1, window_bounds = array<i64: 136, 576>}, {pipeline_mode = #tpu.pipeline_mode<synchronous>, transform_indices = @transform_2, window_bounds = array<i64: 136, 1>}, {transform_indices = @transform_3, window_bounds = array<i64: 136, 136>}, {transform_indices = @transform_4, window_bounds = array<i64: 136, 1>}, {transform_indices = @transform_5, window_bounds = array<i64: 136, 1>}, {transform_indices = @transform_6, window_bounds = array<i64: 136, 196>}]} {
    %c0_i32 = arith.constant 0 : i32
    %0 = arith.cmpi eq, %arg1, %c0_i32 : i32
    %1 = arith.extui %0 : i1 to i32
    %c0_i32_0 = arith.constant 0 : i32
    %2 = arith.cmpi ne, %1, %c0_i32_0 : i32
    scf.if %2 {
      %c0_13 = arith.constant 0 : index
      %c0_14 = arith.constant 0 : index
      %22 = vector.load %arg3[%c0_13, %c0_14] : memref<136x576xf32, #tpu.memory_space<vmem>>, vector<136x576xf32>
      %c0_15 = arith.constant 0 : index
      %c0_16 = arith.constant 0 : index
      %23 = vector.load %arg2[%c0_15, %c0_16] : memref<576x196xf32, #tpu.memory_space<vmem>>, vector<576x196xf32>
      %cst_17 = arith.constant dense<0.000000e+00> : vector<136x196xf32>
      %24 = tpu.matmul %22, %23, %cst_17 {dimension_numbers = #tpu.dot_dimension_numbers<[1], [0], [0], [1], [0, 0, 1, 1], [], []>} : vector<136x576xf32>, vector<576x196xf32>, vector<136x196xf32> -> vector<136x196xf32>
      %cst_18 = arith.constant dense<0.000000e+00> : vector<136xf32>
      %25 = vector.multi_reduction <add>, %24, %cst_18 [1] : vector<136x196xf32> to vector<136xf32>
      %26 = vector.shape_cast %25 : vector<136xf32> to vector<136x1xf32>
      %cst_19 = arith.constant 0.00510204071 : f32
      %27 = vector.broadcast %cst_19 : f32 to vector<136x1xf32>
      %28 = arith.mulf %26, %27 : vector<136x1xf32>
      %29 = vector.broadcast %28 : vector<136x1xf32> to vector<136x196xf32>
      %30 = arith.subf %24, %29 : vector<136x196xf32>
      %31 = arith.mulf %30, %30 : vector<136x196xf32>
      %cst_20 = arith.constant dense<0.000000e+00> : vector<136xf32>
      %32 = vector.multi_reduction <add>, %31, %cst_20 [1] : vector<136x196xf32> to vector<136xf32>
      %33 = vector.shape_cast %32 : vector<136xf32> to vector<136x1xf32>
      %cst_21 = arith.constant 0.00510204071 : f32
      %34 = vector.broadcast %cst_21 : f32 to vector<136x1xf32>
      %35 = arith.mulf %33, %34 : vector<136x1xf32>
      %c0_22 = arith.constant 0 : index
      %c0_23 = arith.constant 0 : index
      %36 = vector.load %arg4[%c0_22, %c0_23] : memref<136x1xf32, #tpu.memory_space<vmem>>, vector<136x1xf32>
      %cst_24 = arith.constant 9.99999974E-6 : f32
      %37 = vector.broadcast %cst_24 : f32 to vector<136x1xf32>
      %38 = arith.addf %35, %37 : vector<136x1xf32>
      %39 = math.rsqrt %38 : vector<136x1xf32>
      %40 = arith.mulf %36, %39 : vector<136x1xf32>
      %41 = vector.broadcast %40 : vector<136x1xf32> to vector<136x196xf32>
      %42 = arith.mulf %30, %41 : vector<136x196xf32>
      %c0_25 = arith.constant 0 : index
      %c0_26 = arith.constant 0 : index
      %43 = vector.load %arg9[%c0_25, %c0_26] : memref<136x196xf32, #tpu.memory_space<vmem>>, vector<136x196xf32>
      tpu.vector_store %arg9[%c0_25, %c0_26], %42 {strides = array<i32>} : memref<136x196xf32, #tpu.memory_space<vmem>>, vector<136x196xf32>,
    } else {
    }
    %c0 = arith.constant 0 : index
    %c0_1 = arith.constant 0 : index
    %3 = vector.load %arg5[%c0, %c0_1] : memref<136x136xf32, #tpu.memory_space<vmem>>, vector<136x136xf32>
    %c0_2 = arith.constant 0 : index
    %c0_3 = arith.constant 0 : index
    %4 = vector.load %arg9[%c0_2, %c0_3] : memref<136x196xf32, #tpu.memory_space<vmem>>, vector<136x196xf32>
    %cst = arith.constant dense<0.000000e+00> : vector<136x196xf32>
    %5 = tpu.matmul %3, %4, %cst {dimension_numbers = #tpu.dot_dimension_numbers<[1], [0], [0], [1], [0, 0, 1, 1], [], []>} : vector<136x136xf32>, vector<136x196xf32>, vector<136x196xf32> -> vector<136x196xf32>
    %6 = arith.mulf %5, %5 : vector<136x196xf32>
    %cst_4 = arith.constant dense<0.000000e+00> : vector<136xf32>
    %7 = vector.multi_reduction <add>, %6, %cst_4 [1] : vector<136x196xf32> to vector<136xf32>
    %8 = vector.shape_cast %7 : vector<136xf32> to vector<136x1xf32>
    %cst_5 = arith.constant 0.00510204071 : f32
    %9 = vector.broadcast %cst_5 : f32 to vector<136x1xf32>
    %10 = arith.mulf %8, %9 : vector<136x1xf32>
    %c0_6 = arith.constant 0 : index
    %c0_7 = arith.constant 0 : index
    %11 = vector.load %arg6[%c0_6, %c0_7] : memref<136x1xf32, #tpu.memory_space<vmem>>, vector<136x1xf32>
    %cst_8 = arith.constant 9.99999974E-6 : f32
    %12 = vector.broadcast %cst_8 : f32 to vector<136x1xf32>
    %13 = arith.addf %10, %12 : vector<136x1xf32>
    %14 = math.rsqrt %13 : vector<136x1xf32>
    %15 = arith.mulf %11, %14 : vector<136x1xf32>
    %16 = vector.broadcast %15 : vector<136x1xf32> to vector<136x196xf32>
    %17 = arith.mulf %5, %16 : vector<136x196xf32>
    %c0_9 = arith.constant 0 : index
    %c0_10 = arith.constant 0 : index
    %18 = vector.load %arg7[%c0_9, %c0_10] : memref<136x1xf32, #tpu.memory_space<vmem>>, vector<136x1xf32>
    %19 = vector.broadcast %18 : vector<136x1xf32> to vector<136x196xf32>
    %20 = arith.addf %17, %19 : vector<136x196xf32>
    %c0_11 = arith.constant 0 : index
    %c0_12 = arith.constant 0 : index
    %21 = vector.load %arg8[%c0_11, %c0_12] : memref<136x196xf32, #tpu.memory_space<vmem>>, vector<136x196xf32>
    tpu.vector_store %arg8[%c0_11, %c0_12], %20 {strides = array<i32>} : memref<136x196xf32, #tpu.memory_space<vmem>>, vector<136x196xf32>,
    return
  }
  func.func @transform_0(%arg0: i32, %arg1: i32) -> (i32, i32) {
    %c0_i32 = arith.constant 0 : i32
    %c0_i32_0 = arith.constant 0 : i32
    %c0_i32_1 = arith.constant 0 : i32
    return %c0_i32, %c0_i32_0 : i32, i32
  }
  func.func @transform_1(%arg0: i32, %arg1: i32) -> (i32, i32) {
    %c0_i32 = arith.constant 0 : i32
    %c0_i32_0 = arith.constant 0 : i32
    %c0_i32_1 = arith.constant 0 : i32
    return %c0_i32, %c0_i32_0 : i32, i32
  }
  func.func @transform_2(%arg0: i32, %arg1: i32) -> (i32, i32) {
    %c0_i32 = arith.constant 0 : i32
    %c0_i32_0 = arith.constant 0 : i32
    %c0_i32_1 = arith.constant 0 : i32
    return %c0_i32, %c0_i32_0 : i32, i32
  }
  func.func @transform_3(%arg0: i32, %arg1: i32) -> (i32, i32) {
    %c3_i32 = arith.constant 3 : i32
    %0 = arith.muli %arg0, %c3_i32 : i32
    %1 = arith.addi %0, %arg1 : i32
    %c0_i32 = arith.constant 0 : i32
    %c0_i32_0 = arith.constant 0 : i32
    return %1, %c0_i32 : i32, i32
  }
  func.func @transform_4(%arg0: i32, %arg1: i32) -> (i32, i32) {
    %c3_i32 = arith.constant 3 : i32
    %0 = arith.muli %arg0, %c3_i32 : i32
    %1 = arith.addi %0, %arg1 : i32
    %c0_i32 = arith.constant 0 : i32
    %c0_i32_0 = arith.constant 0 : i32
    return %1, %c0_i32 : i32, i32
  }
  func.func @transform_5(%arg0: i32, %arg1: i32) -> (i32, i32) {
    %c3_i32 = arith.constant 3 : i32
    %0 = arith.muli %arg0, %c3_i32 : i32
    %1 = arith.addi %0, %arg1 : i32
    %c0_i32 = arith.constant 0 : i32
    %c0_i32_0 = arith.constant 0 : i32
    return %1, %c0_i32 : i32, i32
  }
  func.func @transform_6(%arg0: i32, %arg1: i32) -> (i32, i32) {
    %c3_i32 = arith.constant 3 : i32
    %0 = arith.muli %arg0, %c3_i32 : i32
    %1 = arith.addi %0, %arg1 : i32
    %c0_i32 = arith.constant 0 : i32
    %c0_i32_0 = arith.constant 0 : i32
    return %1, %c0_i32 : i32, i32
  }
}

</mosaic_0001>

<llo_original>
// kernel: mul_conv_bn_conv_bn.1
$region0: #{mul_conv_bn_conv_bn.1}
  #allocation0 [shape = 'u32[]', space=smem, size = 0x4, offset = 0x4, fixed_abs, tag = 'smem constant byte address 0x4 - core index']
  #allocation1 [shape = 'u32[144,128]{1,0:T(1,128)}', space=vmem, size = 0x12000, scoped, tag = 'internal scratch']
  #allocation2 [shape = 'f32[136,196]{1,0:T(8,128)}', space=vmem, size = 0x22000, scoped, tag = 'scratch operand']
  %s0 = inlined_call_operand.vmem [shape: f32[576,196], index: 0, kind: input, shape index: {}]
  %s1 = inlined_call_operand.vmem [shape: f32[136,576], index: 1, kind: input, shape index: {}]
  %s2 = inlined_call_operand.vmem [shape: f32[136,1], index: 2, kind: input, shape index: {}]
  %s3 = inlined_call_operand.vmem [shape: f32[816,136], index: 3, kind: input, shape index: {}]
  %s4 = inlined_call_operand.vmem [shape: f32[816,1], index: 4, kind: input, shape index: {}]
  %s5 = inlined_call_operand.vmem [shape: f32[816,1], index: 5, kind: input, shape index: {}]
  %s6 = inlined_call_operand.vmem [shape: f32[816,196], index: 6, kind: output, shape index: {}]
  %s7 = sld [smem:[#allocation0]]
  $region61: #{mul_conv_bn_conv_bn.1} parent=0
    _
  %s9 = ssub.s32 1, %s7
  %s10 = scalar_select 0, %s9, %s7
  loop: start=0, step=1, limit=8
  $region2: #{mul_conv_bn_conv_bn.1} parent=0 // loop_pre_header
    _
  $region3: #{mul_conv_bn_conv_bn.1} parent=0 // loop_header
    %s12 = sphi 0, %s16
    %p13 = scmp.ge.s32.totalorder %s12, 8
    %s19 = sphi 0, %s31
    %s20 = sphi 0, %s27
    %s21 = sphi 0, %s19
    %s22 = sphi 0, %s20
    %s23 = sphi 0, %s21
    %s24 = sphi 0, %s22
    %s32 = sphi 0, %s32
    %s34 = sphi 0, %s32
    %s35 = sphi 0, %s34
    %s49 = sphi 0, %s35
    %s53 = sphi 0, %s53
    %s55 = sphi 0, %s53
    %s56 = sphi 0, %s55
    %s70 = sphi 0, %s56
    %s74 = sphi 0, %s74
    %s76 = sphi 0, %s74
    %s77 = sphi 0, %s76
    %s91 = sphi 0, %s77
    %s101 = sphi 0, %s103
    %s104 = sphi 0, %s101
    %s105 = sphi 0, %s104
    %s121 = sphi 0, %s105
    %s131 = sphi 0, %s133
    %s134 = sphi 0, %s131
    %s135 = sphi 0, %s134
    %s151 = sphi 0, %s135
    %s161 = sphi 0, %s163
    %s164 = sphi 0, %s161
    %s165 = sphi 0, %s164
    %s181 = sphi 0, %s165
    %s191 = sphi 0, %s193
    %s194 = sphi 0, %s191
    %s195 = sphi 0, %s194
    %s211 = sphi 0, %s195
  $region4: #{mul_conv_bn_conv_bn.1} parent=0 // loop_header_branch
    %15 = sbr.rel (%p13) target = $region8
  $region5: #{mul_conv_bn_conv_bn.1} parent=0 // loop_body
    %s17 = ssub.s32 %s12, 1
    %s18 = ssub.s32 %s12, 2
    %s25 = sadd.s32 1, %s20
    %p26 = scmp.ge.s32.totalorder %s25, 3
    %s27 = scalar_select %p26, 0, %s25
    %s28 = sadd.s32 1, %s19
    %s29 = scalar_select %p26, %s28, %s19
    %p30 = scmp.ge.s32.totalorder %s29, 2
    %s31 = scalar_select %p30, 0, %s29
    %s33 = sadd.s32 %s32, 1
    %p36 = scmp.eq.s32.totalorder %s12, 5
    %p37 = scmp.ne.s32.totalorder %s32, %s34
    %p38 = scmp.eq.s32.totalorder %s12, 0
    %p39 = por %p37, %p38
    %p40 = scmp.ne.s32.totalorder %s32, %s34
    %p41 = scmp.eq.s32.totalorder %s17, 5
    %p42 = por %p40, %p41
    %p43 = scmp.ne.s32.totalorder %s34, %s35
    %p44 = scmp.eq.s32.totalorder %s17, 0
    %p45 = por %p43, %p44
    %p46 = scmp.ne.s32.totalorder %s34, %s35
    %p47 = scmp.eq.s32.totalorder %s18, 5
    %p48 = por %p46, %p47
    %p50 = scmp.ne.s32.totalorder %s35, %s49
    %p51 = scmp.eq.s32.totalorder %s18, 0
    %p52 = por %p50, %p51
    %s54 = sadd.s32 %s53, 1
    %p57 = scmp.eq.s32.totalorder %s12, 5
    %p58 = scmp.ne.s32.totalorder %s53, %s55
    %p59 = scmp.eq.s32.totalorder %s12, 0
    %p60 = por %p58, %p59
    %p61 = scmp.ne.s32.totalorder %s53, %s55
    %p62 = scmp.eq.s32.totalorder %s17, 5
    %p63 = por %p61, %p62
    %p64 = scmp.ne.s32.totalorder %s55, %s56
    %p65 = scmp.eq.s32.totalorder %s17, 0
    %p66 = por %p64, %p65
    %p67 = scmp.ne.s32.totalorder %s55, %s56
    %p68 = scmp.eq.s32.totalorder %s18, 5
    %p69 = por %p67, %p68
    %p71 = scmp.ne.s32.totalorder %s56, %s70
    %p72 = scmp.eq.s32.totalorder %s18, 0
    %p73 = por %p71, %p72
    %s75 = sadd.s32 %s74, 1
    %p78 = scmp.eq.s32.totalorder %s12, 5
    %p79 = scmp.ne.s32.totalorder %s74, %s76
    %p80 = scmp.eq.s32.totalorder %s12, 0
    %p81 = por %p79, %p80
    %p82 = scmp.ne.s32.totalorder %s74, %s76
    %p83 = scmp.eq.s32.totalorder %s17, 5
    %p84 = por %p82, %p83
    %p85 = scmp.ne.s32.totalorder %s76, %s77
    %p86 = scmp.eq.s32.totalorder %s17, 0
    %p87 = por %p85, %p86
    %p88 = scmp.ne.s32.totalorder %s76, %s77
    %p89 = scmp.eq.s32.totalorder %s18, 5
    %p90 = por %p88, %p89
    %p92 = scmp.ne.s32.totalorder %s77, %s91
    %p93 = scmp.eq.s32.totalorder %s18, 0
    %p94 = por %p92, %p93
    %s95 = smul.u32 %s19, 3
    %s96 = sadd.s32 %s95, %s20
    %s97 = smul.u32 %s31, 3
    %s98 = sadd.s32 %s97, %s27
    %s99 = ssub.s32 %s96, %s98
    %p100 = scmp.eq.s32.totalorder %s99, 0
    %s102 = sadd.s32 %s101, 1
    %s103 = scalar_select %p100, %s101, %s102
    %p106 = pneg %p100
    %p107 = scmp.eq.s32.totalorder %s12, 5
    %p108 = por %p106, %p107
    %p109 = scmp.ne.s32.totalorder %s101, %s104
    %p110 = scmp.eq.s32.totalorder %s12, 0
    %p111 = por %p109, %p110
    %p112 = scmp.ne.s32.totalorder %s101, %s104
    %p113 = scmp.eq.s32.totalorder %s17, 5
    %p114 = por %p112, %p113
    %p115 = scmp.ne.s32.totalorder %s104, %s105
    %p116 = scmp.eq.s32.totalorder %s17, 0
    %p117 = por %p115, %p116
    %p118 = scmp.ne.s32.totalorder %s104, %s105
    %p119 = scmp.eq.s32.totalorder %s18, 5
    %p120 = por %p118, %p119
    %p122 = scmp.ne.s32.totalorder %s105, %s121
    %p123 = scmp.eq.s32.totalorder %s18, 0
    %p124 = por %p122, %p123
    %s125 = smul.u32 %s19, 3
    %s126 = sadd.s32 %s125, %s20
    %s127 = smul.u32 %s31, 3
    %s128 = sadd.s32 %s127, %s27
    %s129 = ssub.s32 %s126, %s128
    %p130 = scmp.eq.s32.totalorder %s129, 0
    %s132 = sadd.s32 %s131, 1
    %s133 = scalar_select %p130, %s131, %s132
    %p136 = pneg %p130
    %p137 = scmp.eq.s32.totalorder %s12, 5
    %p138 = por %p136, %p137
    %p139 = scmp.ne.s32.totalorder %s131, %s134
    %p140 = scmp.eq.s32.totalorder %s12, 0
    %p141 = por %p139, %p140
    %p142 = scmp.ne.s32.totalorder %s131, %s134
    %p143 = scmp.eq.s32.totalorder %s17, 5
    %p144 = por %p142, %p143
    %p145 = scmp.ne.s32.totalorder %s134, %s135
    %p146 = scmp.eq.s32.totalorder %s17, 0
    %p147 = por %p145, %p146
    %p148 = scmp.ne.s32.totalorder %s134, %s135
    %p149 = scmp.eq.s32.totalorder %s18, 5
    %p150 = por %p148, %p149
    %p152 = scmp.ne.s32.totalorder %s135, %s151
    %p153 = scmp.eq.s32.totalorder %s18, 0
    %p154 = por %p152, %p153
    %s155 = smul.u32 %s19, 3
    %s156 = sadd.s32 %s155, %s20
    %s157 = smul.u32 %s31, 3
    %s158 = sadd.s32 %s157, %s27
    %s159 = ssub.s32 %s156, %s158
    %p160 = scmp.eq.s32.totalorder %s159, 0
    %s162 = sadd.s32 %s161, 1
    %s163 = scalar_select %p160, %s161, %s162
    %p166 = pneg %p160
    %p167 = scmp.eq.s32.totalorder %s12, 5
    %p168 = por %p166, %p167
    %p169 = scmp.ne.s32.totalorder %s161, %s164
    %p170 = scmp.eq.s32.totalorder %s12, 0
    %p171 = por %p169, %p170
    %p172 = scmp.ne.s32.totalorder %s161, %s164
    %p173 = scmp.eq.s32.totalorder %s17, 5
    %p174 = por %p172, %p173
    %p175 = scmp.ne.s32.totalorder %s164, %s165
    %p176 = scmp.eq.s32.totalorder %s17, 0
    %p177 = por %p175, %p176
    %p178 = scmp.ne.s32.totalorder %s164, %s165
    %p179 = scmp.eq.s32.totalorder %s18, 5
    %p180 = por %p178, %p179
    %p182 = scmp.ne.s32.totalorder %s165, %s181
    %p183 = scmp.eq.s32.totalorder %s18, 0
    %p184 = por %p182, %p183
    %s185 = smul.u32 %s19, 3
    %s186 = sadd.s32 %s185, %s20
    %s187 = smul.u32 %s31, 3
    %s188 = sadd.s32 %s187, %s27
    %s189 = ssub.s32 %s186, %s188
    %p190 = scmp.eq.s32.totalorder %s189, 0
    %s192 = sadd.s32 %s191, 1
    %s193 = scalar_select %p190, %s191, %s192
    %p196 = pneg %p190
    %p197 = scmp.eq.s32.totalorder %s12, 5
    %p198 = por %p196, %p197
    %p199 = scmp.ne.s32.totalorder %s191, %s194
    %p200 = scmp.eq.s32.totalorder %s12, 0
    %p201 = por %p199, %p200
    %p202 = scmp.ne.s32.totalorder %s191, %s194
    %p203 = scmp.eq.s32.totalorder %s17, 5
    %p204 = por %p202, %p203
    %p205 = scmp.ne.s32.totalorder %s194, %s195
    %p206 = scmp.eq.s32.totalorder %s17, 0
    %p207 = por %p205, %p206
    %p208 = scmp.ne.s32.totalorder %s194, %s195
    %p209 = scmp.eq.s32.totalorder %s18, 5
    %p210 = por %p208, %p209
    %p212 = scmp.ne.s32.totalorder %s195, %s211
    %p213 = scmp.eq.s32.totalorder %s18, 0
    %p214 = por %p212, %p213
    %p215 = scmp.le.s32.totalorder 1, %s12
    %p216 = scmp.lt.s32.totalorder %s12, 7
    %p217 = pnand %p215, %p216
    %p218 = pneg %p217
    // Predicated region
    $region9: #{mul_conv_bn_conv_bn.1} parent=5 // pred_check
      _
    $region10: #{mul_conv_bn_conv_bn.1} parent=5 // pred_check_branch
      %220 = sbr.rel (%p217) target = $region12
    $region11: #{mul_conv_bn_conv_bn.1} parent=5 // pred_region
      %s221 = ssub.s32 %s12, 1
      // Predicated region
      $region13: #{mul_conv_bn_conv_bn.1} parent=11 // pred_check
        %p222 = pneg %p45
      $region14: #{mul_conv_bn_conv_bn.1} parent=11 // pred_check_branch
        %224 = sbr.rel (%p222) target = $region16
      $region15: #{mul_conv_bn_conv_bn.1} parent=11 // pred_region
        _
      $region16: #{mul_conv_bn_conv_bn.1} parent=11 // pred_fallthru
        _
      // Predicated region
      $region17: #{mul_conv_bn_conv_bn.1} parent=11 // pred_check
        %p225 = pneg %p66
      $region18: #{mul_conv_bn_conv_bn.1} parent=11 // pred_check_branch
        %227 = sbr.rel (%p225) target = $region20
      $region19: #{mul_conv_bn_conv_bn.1} parent=11 // pred_region
        _
      $region20: #{mul_conv_bn_conv_bn.1} parent=11 // pred_fallthru
        _
      // Predicated region
      $region21: #{mul_conv_bn_conv_bn.1} parent=11 // pred_check
        %p228 = pneg %p87
      $region22: #{mul_conv_bn_conv_bn.1} parent=11 // pred_check_branch
        %230 = sbr.rel (%p228) target = $region24
      $region23: #{mul_conv_bn_conv_bn.1} parent=11 // pred_region
        _
      $region24: #{mul_conv_bn_conv_bn.1} parent=11 // pred_fallthru
        _
    $region12: #{mul_conv_bn_conv_bn.1} parent=5 // pred_fallthru
      _
    %p231 = scmp.lt.s32.totalorder %s12, 6
    // Predicated region
    $region25: #{mul_conv_bn_conv_bn.1} parent=5 // pred_check
      %p232 = pneg %p231
    $region26: #{mul_conv_bn_conv_bn.1} parent=5 // pred_check_branch
      %234 = sbr.rel (%p232) target = $region28
    $region27: #{mul_conv_bn_conv_bn.1} parent=5 // pred_region
      // Predicated region
      $region29: #{mul_conv_bn_conv_bn.1} parent=27 // pred_check
        %p235 = pneg %p111
      $region30: #{mul_conv_bn_conv_bn.1} parent=27 // pred_check_branch
        %237 = sbr.rel (%p235) target = $region32
      $region31: #{mul_conv_bn_conv_bn.1} parent=27 // pred_region
        %s238 = smul.u32 %s19, 3
        %s239 = sadd.s32 %s238, %s20
        %s240 = smul.u32 17, %s239
        %p241 = scmp.lt.s32.totalorder %s240, 101
        %s242 = scalar_select %p241, %s240, 101
        %s243 = smul.addr %s242, 2
        %s244 = smul.addr %s243, 8
        %s245 = scalar_lea.vmem %s3, %s244
        %s246 = smul.u32 %s19, 3
        %s247 = sadd.s32 %s246, %s20
        %s248 = smul.u32 17, %s247
      $region32: #{mul_conv_bn_conv_bn.1} parent=27 // pred_fallthru
        _
      // Predicated region
      $region33: #{mul_conv_bn_conv_bn.1} parent=27 // pred_check
        %p249 = pneg %p141
      $region34: #{mul_conv_bn_conv_bn.1} parent=27 // pred_check_branch
        %251 = sbr.rel (%p249) target = $region36
      $region35: #{mul_conv_bn_conv_bn.1} parent=27 // pred_region
        %s252 = smul.u32 %s19, 3
        %s253 = sadd.s32 %s252, %s20
        %s254 = smul.u32 17, %s253
        %p255 = scmp.lt.s32.totalorder %s254, 101
        %s256 = scalar_select %p255, %s254, 101
        %s257 = smul.addr %s256, 8
        %s258 = scalar_lea.vmem %s4, %s257
        %s259 = smul.u32 %s19, 3
        %s260 = sadd.s32 %s259, %s20
        %s261 = smul.u32 17, %s260
      $region36: #{mul_conv_bn_conv_bn.1} parent=27 // pred_fallthru
        _
      // Predicated region
      $region37: #{mul_conv_bn_conv_bn.1} parent=27 // pred_check
        %p262 = pneg %p171
      $region38: #{mul_conv_bn_conv_bn.1} parent=27 // pred_check_branch
        %264 = sbr.rel (%p262) target = $region40
      $region39: #{mul_conv_bn_conv_bn.1} parent=27 // pred_region
        %s265 = smul.u32 %s19, 3
        %s266 = sadd.s32 %s265, %s20
        %s267 = smul.u32 17, %s266
        %p268 = scmp.lt.s32.totalorder %s267, 101
        %s269 = scalar_select %p268, %s267, 101
        %s270 = smul.addr %s269, 8
        %s271 = scalar_lea.vmem %s5, %s270
        %s272 = smul.u32 %s19, 3
        %s273 = sadd.s32 %s272, %s20
        %s274 = smul.u32 17, %s273
      $region40: #{mul_conv_bn_conv_bn.1} parent=27 // pred_fallthru
        _
    $region28: #{mul_conv_bn_conv_bn.1} parent=5 // pred_fallthru
      _
    %p275 = scmp.le.s32.totalorder 1, %s12
    %p276 = scmp.lt.s32.totalorder %s12, 7
    %p277 = pnand %p275, %p276
    %p278 = pneg %p277
    // Predicated region
    $region41: #{mul_conv_bn_conv_bn.1} parent=5 // pred_check
      _
    $region42: #{mul_conv_bn_conv_bn.1} parent=5 // pred_check_branch
      %280 = sbr.rel (%p277) target = $region44
    $region43: #{mul_conv_bn_conv_bn.1} parent=5 // pred_region
      %s281 = ssub.s32 %s12, 1
      %p282 = pneg %p45
      %p283 = pneg %p42
      %p284 = pneg %p66
      %p285 = pneg %p63
      %p286 = pneg %p87
      %p287 = pneg %p84
      %s288 = smul.u32 %s21, 3
      %s289 = sadd.s32 %s288, %s22
      %s290 = smul.u32 17, %s289
      %p291 = scmp.lt.s32.totalorder %s290, 101
      %s292 = scalar_select %p291, %s290, 101
      %s293 = smul.addr %s292, 2
      %s294 = smul.addr %s293, 8
      %s295 = scalar_lea.vmem %s3, %s294
      %p296 = pneg %p117
      %p297 = pneg %p114
      %s298 = smul.u32 %s21, 3
      %s299 = sadd.s32 %s298, %s22
      %s300 = smul.u32 17, %s299
      %p301 = scmp.lt.s32.totalorder %s300, 101
      %s302 = scalar_select %p301, %s300, 101
      %s303 = smul.addr %s302, 8
      %s304 = scalar_lea.vmem %s4, %s303
      %p305 = pneg %p147
      %p306 = pneg %p144
      %s307 = smul.u32 %s21, 3
      %s308 = sadd.s32 %s307, %s22
      %s309 = smul.u32 17, %s308
      %p310 = scmp.lt.s32.totalorder %s309, 101
      %s311 = scalar_select %p310, %s309, 101
      %s312 = smul.addr %s311, 8
      %s313 = scalar_lea.vmem %s5, %s312
      %p314 = pneg %p177
      %p315 = pneg %p174
      %p316 = pneg %p207
      %p317 = pneg %p204
      %s318 = smul.u32 %s21, 3
      %s319 = sadd.s32 %s318, %s22
      %s320 = smul.u32 17, %s319
      %p321 = scmp.lt.s32.totalorder %s320, 101
      %s322 = scalar_select %p321, %s320, 101
      %s323 = smul.addr %s322, 2
      %s324 = smul.addr %s323, 8
      %s325 = scalar_lea.vmem %s6, %s324
      %s326 = smul.u32 %s21, 3
      %s327 = sadd.s32 %s326, %s22
      %s328 = smul.u32 17, %s327
      %p329 = scmp.lt.s32.totalorder %s328, 101
      %s330 = scalar_select %p329, %s328, 101
      %s331 = smul.addr %s330, 2
      %s332 = smul.addr %s331, 8
      %s333 = scalar_lea.vmem %s3, %s332
      %s334 = smul.u32 %s21, 3
      %s335 = sadd.s32 %s334, %s22
      %s336 = smul.u32 17, %s335
      %s337 = smul.u32 %s21, 3
      %s338 = sadd.s32 %s337, %s22
      %s339 = smul.u32 17, %s338
      %p340 = scmp.lt.s32.totalorder %s339, 101
      %s341 = scalar_select %p340, %s339, 101
      %s342 = smul.addr %s341, 8
      %s343 = scalar_lea.vmem %s4, %s342
      %s344 = smul.u32 %s21, 3
      %s345 = sadd.s32 %s344, %s22
      %s346 = smul.u32 17, %s345
      %s347 = smul.u32 %s21, 3
      %s348 = sadd.s32 %s347, %s22
      %s349 = smul.u32 17, %s348
      %p350 = scmp.lt.s32.totalorder %s349, 101
      %s351 = scalar_select %p350, %s349, 101
      %s352 = smul.addr %s351, 8
      %s353 = scalar_lea.vmem %s5, %s352
      %s354 = smul.u32 %s21, 3
      %s355 = sadd.s32 %s354, %s22
      %s356 = smul.u32 17, %s355
      %s357 = smul.u32 %s21, 3
      %s358 = sadd.s32 %s357, %s22
      %s359 = smul.u32 17, %s358
      %p360 = scmp.lt.s32.totalorder %s359, 101
      %s361 = scalar_select %p360, %s359, 101
      %s362 = smul.addr %s361, 2
      %s363 = smul.addr %s362, 8
      %s364 = scalar_lea.vmem %s6, %s363
      %s365 = smul.u32 %s21, 3
      %s366 = sadd.s32 %s365, %s22
      %s367 = smul.u32 17, %s366
      %p368 = scmp.eq.s32.totalorder %s22, 0
      // Predicated region
      $region45: #{mul_conv_bn_conv_bn.1} parent=43 // pred_check
        %p369 = pneg %p368
      $region46: #{mul_conv_bn_conv_bn.1} parent=43 // pred_check_branch
        %371 = sbr.rel (%p369) target = $region48
      $region47: #{mul_conv_bn_conv_bn.1} parent=43 // pred_region
        %v372 = vld [vmem:[%s1] sm:$0xff]
        %v373 = vld [vmem:[%s1 + $0x8] sm:$0xff]
        %v374 = vld [vmem:[%s1 + $0x10] sm:$0xff]
        %v375 = vld [vmem:[%s1 + $0x18] sm:$0xff]
        %v376 = vld [vmem:[%s1 + $0x20] sm:$0xff]
        %v377 = vld [vmem:[%s1 + $0x28] sm:$0xff]
        %v378 = vld [vmem:[%s1 + $0x30] sm:$0xff]
        %v379 = vld [vmem:[%s1 + $0x38] sm:$0xff]
        %v380 = vld [vmem:[%s1 + $0x40] sm:$0xff]
        %v381 = vld [vmem:[%s1 + $0x48] sm:$0xff]
        %v382 = vld [vmem:[%s1 + $0x50] sm:$0xff]
        %v383 = vld [vmem:[%s1 + $0x58] sm:$0xff]
        %v384 = vld [vmem:[%s1 + $0x60] sm:$0xff]
        %v385 = vld [vmem:[%s1 + $0x68] sm:$0xff]
        %v386 = vld [vmem:[%s1 + $0x70] sm:$0xff]
        %v387 = vld [vmem:[%s1 + $0x78] sm:$0xff]
        %v388 = vld [vmem:[%s1 + $0x80] sm:$0xff]
        %v389 = vld [vmem:[%s1 + $0x88] sm:$0xff]
        %v390 = vld [vmem:[%s1 + $0x90] sm:$0xff]
        %v391 = vld [vmem:[%s1 + $0x98] sm:$0xff]
        %v392 = vld [vmem:[%s1 + $0xa0] sm:$0xff]
        %v393 = vld [vmem:[%s1 + $0xa8] sm:$0xff]
        %v394 = vld [vmem:[%s1 + $0xb0] sm:$0xff]
        %v395 = vld [vmem:[%s1 + $0xb8] sm:$0xff]
        %v396 = vld [vmem:[%s1 + $0xc0] sm:$0xff]
        %v397 = vld [vmem:[%s1 + $0xc8] sm:$0xff]
        %v398 = vld [vmem:[%s1 + $0xd0] sm:$0xff]
        %v399 = vld [vmem:[%s1 + $0xd8] sm:$0xff]
        %v400 = vld [vmem:[%s1 + $0xe0] sm:$0xff]
        %v401 = vld [vmem:[%s1 + $0xe8] sm:$0xff]
        %v402 = vld [vmem:[%s1 + $0xf0] sm:$0xff]
        %v403 = vld [vmem:[%s1 + $0xf8] sm:$0xff]
        %v404 = vld [vmem:[%s1 + $0x100] sm:$0xff]
        %v405 = vld [vmem:[%s1 + $0x108] sm:$0xff]
        %v406 = vld [vmem:[%s1 + $0x110] sm:$0xff]
        %v407 = vld [vmem:[%s1 + $0x118] sm:$0xff]
        %v408 = vld [vmem:[%s1 + $0x120] sm:$0xff]
        %v409 = vld [vmem:[%s1 + $0x128] sm:$0xff]
        %v410 = vld [vmem:[%s1 + $0x130] sm:$0xff]
        %v411 = vld [vmem:[%s1 + $0x138] sm:$0xff]
        %v412 = vld [vmem:[%s1 + $0x140] sm:$0xff]
        %v413 = vld [vmem:[%s1 + $0x148] sm:$0xff]
        %v414 = vld [vmem:[%s1 + $0x150] sm:$0xff]
        %v415 = vld [vmem:[%s1 + $0x158] sm:$0xff]
        %v416 = vld [vmem:[%s1 + $0x160] sm:$0xff]
        %v417 = vld [vmem:[%s1 + $0x168] sm:$0xff]
        %v418 = vld [vmem:[%s1 + $0x170] sm:$0xff]
        %v419 = vld [vmem:[%s1 + $0x178] sm:$0xff]
        %v420 = vld [vmem:[%s1 + $0x180] sm:$0xff]
        %v421 = vld [vmem:[%s1 + $0x188] sm:$0xff]
        %v422 = vld [vmem:[%s1 + $0x190] sm:$0xff]
        %v423 = vld [vmem:[%s1 + $0x198] sm:$0xff]
        %v424 = vld [vmem:[%s1 + $0x1a0] sm:$0xff]
        %v425 = vld [vmem:[%s1 + $0x1a8] sm:$0xff]
        %v426 = vld [vmem:[%s1 + $0x1b0] sm:$0xff]
        %v427 = vld [vmem:[%s1 + $0x1b8] sm:$0xff]
        %v428 = vld [vmem:[%s1 + $0x1c0] sm:$0xff]
        %v429 = vld [vmem:[%s1 + $0x1c8] sm:$0xff]
        %v430 = vld [vmem:[%s1 + $0x1d0] sm:$0xff]
        %v431 = vld [vmem:[%s1 + $0x1d8] sm:$0xff]
        %v432 = vld [vmem:[%s1 + $0x1e0] sm:$0xff]
        %v433 = vld [vmem:[%s1 + $0x1e8] sm:$0xff]
        %v434 = vld [vmem:[%s1 + $0x1f0] sm:$0xff]
        %v435 = vld [vmem:[%s1 + $0x1f8] sm:$0xff]
        %v436 = vld [vmem:[%s1 + $0x200] sm:$0xff]
        %v437 = vld [vmem:[%s1 + $0x208] sm:$0xff]
        %v438 = vld [vmem:[%s1 + $0x210] sm:$0xff]
        %v439 = vld [vmem:[%s1 + $0x218] sm:$0xff]
        %v440 = vld [vmem:[%s1 + $0x220] sm:$0xff]
        %v441 = vld [vmem:[%s1 + $0x228] sm:$0xff]
        %v442 = vld [vmem:[%s1 + $0x230] sm:$0xff]
        %v443 = vld [vmem:[%s1 + $0x238] sm:$0xff]
        %v444 = vld [vmem:[%s1 + $0x240] sm:$0xff]
        %v445 = vld [vmem:[%s1 + $0x248] sm:$0xff]
        %v446 = vld [vmem:[%s1 + $0x250] sm:$0xff]
        %v447 = vld [vmem:[%s1 + $0x258] sm:$0xff]
        %v448 = vld [vmem:[%s1 + $0x260] sm:$0xff]
        %v449 = vld [vmem:[%s1 + $0x268] sm:$0xff]
        %v450 = vld [vmem:[%s1 + $0x270] sm:$0xff]
        %v451 = vld [vmem:[%s1 + $0x278] sm:$0xff]
        %v452 = vld [vmem:[%s1 + $0x280] sm:$0xff]
        %v453 = vld [vmem:[%s1 + $0x288] sm:$0xff]
        %v454 = vld [vmem:[%s1 + $0x290] sm:$0xff]
        %v455 = vld [vmem:[%s1 + $0x298] sm:$0xff]
        %v456 = vld [vmem:[%s1 + $0x2a0] sm:$0xff]
        %v457 = vld [vmem:[%s0] sm:$0xff]
        %v458 = vld [vmem:[%s0 + $0x8] sm:$0xff]
        %v459 = vld [vmem:[%s0 + $0x10] sm:$0xff]
        %v460 = vld [vmem:[%s0 + $0x18] sm:$0xff]
        %v461 = vld [vmem:[%s0 + $0x20] sm:$0xff]
        %v462 = vld [vmem:[%s0 + $0x28] sm:$0xff]
        %v463 = vld [vmem:[%s0 + $0x30] sm:$0xff]
        %v464 = vld [vmem:[%s0 + $0x38] sm:$0xff]
        %v465 = vld [vmem:[%s0 + $0x40] sm:$0xff]
        %v466 = vld [vmem:[%s0 + $0x48] sm:$0xff]
        %v467 = vld [vmem:[%s0 + $0x50] sm:$0xff]
        %v468 = vld [vmem:[%s0 + $0x58] sm:$0xff]
        %v469 = vld [vmem:[%s0 + $0x60] sm:$0xff]
        %v470 = vld [vmem:[%s0 + $0x68] sm:$0xff]
        %v471 = vld [vmem:[%s0 + $0x70] sm:$0xff]
        %v472 = vld [vmem:[%s0 + $0x78] sm:$0xff]
        %v473 = vld [vmem:[%s0 + $0x80] sm:$0xff]
        %v474 = vld [vmem:[%s0 + $0x88] sm:$0xff]
        %v475 = vld [vmem:[%s0 + $0x90] sm:$0xff]
        %v476 = vld [vmem:[%s0 + $0x98] sm:$0xff]
        %v477 = vld [vmem:[%s0 + $0xa0] sm:$0xff]
        %v478 = vld [vmem:[%s0 + $0xa8] sm:$0xff]
        %v479 = vld [vmem:[%s0 + $0xb0] sm:$0xff]
        %v480 = vld [vmem:[%s0 + $0xb8] sm:$0xff]
        %v481 = vld [vmem:[%s0 + $0xc0] sm:$0xff]
        %v482 = vld [vmem:[%s0 + $0xc8] sm:$0xff]
        %v483 = vld [vmem:[%s0 + $0xd0] sm:$0xff]
        %v484 = vld [vmem:[%s0 + $0xd8] sm:$0xff]
        %v485 = vld [vmem:[%s0 + $0xe0] sm:$0xff]
        %v486 = vld [vmem:[%s0 + $0xe8] sm:$0xff]
        %v487 = vld [vmem:[%s0 + $0xf0] sm:$0xff]
        %v488 = vld [vmem:[%s0 + $0xf8] sm:$0xff]
        %v489 = vld [vmem:[%s0 + $0x100] sm:$0xff]
        %v490 = vld [vmem:[%s0 + $0x108] sm:$0xff]
        %v491 = vld [vmem:[%s0 + $0x110] sm:$0xff]
        %v492 = vld [vmem:[%s0 + $0x118] sm:$0xff]
        %v493 = vld [vmem:[%s0 + $0x120] sm:$0xff]
        %v494 = vld [vmem:[%s0 + $0x128] sm:$0xff]
        %v495 = vld [vmem:[%s0 + $0x130] sm:$0xff]
        %v496 = vld [vmem:[%s0 + $0x138] sm:$0xff]
        %v497 = vld [vmem:[%s0 + $0x140] sm:$0xff]
        %v498 = vld [vmem:[%s0 + $0x148] sm:$0xff]
        %v499 = vld [vmem:[%s0 + $0x150] sm:$0xff]
        %v500 = vld [vmem:[%s0 + $0x158] sm:$0xff]
        %v501 = vld [vmem:[%s0 + $0x160] sm:$0xff]
        %v502 = vld [vmem:[%s0 + $0x168] sm:$0xff]
        %v503 = vld [vmem:[%s0 + $0x170] sm:$0xff]
        %v504 = vld [vmem:[%s0 + $0x178] sm:$0xff]
        %v505 = vld [vmem:[%s0 + $0x180] sm:$0xff]
        %v506 = vld [vmem:[%s0 + $0x188] sm:$0xff]
        %v507 = vld [vmem:[%s0 + $0x190] sm:$0xff]
        %v508 = vld [vmem:[%s0 + $0x198] sm:$0xff]
        %v509 = vld [vmem:[%s0 + $0x1a0] sm:$0xff]
        %v510 = vld [vmem:[%s0 + $0x1a8] sm:$0xff]
        %v511 = vld [vmem:[%s0 + $0x1b0] sm:$0xff]
        %v512 = vld [vmem:[%s0 + $0x1b8] sm:$0xff]
        %v513 = vld [vmem:[%s0 + $0x1c0] sm:$0xff]
        %v514 = vld [vmem:[%s0 + $0x1c8] sm:$0xff]
        %v515 = vld [vmem:[%s0 + $0x1d0] sm:$0xff]
        %v516 = vld [vmem:[%s0 + $0x1d8] sm:$0xff]
        %v517 = vld [vmem:[%s0 + $0x1e0] sm:$0xff]
        %v518 = vld [vmem:[%s0 + $0x1e8] sm:$0xff]
        %v519 = vld [vmem:[%s0 + $0x1f0] sm:$0xff]
        %v520 = vld [vmem:[%s0 + $0x1f8] sm:$0xff]
        %v521 = vld [vmem:[%s0 + $0x200] sm:$0xff]
        %v522 = vld [vmem:[%s0 + $0x208] sm:$0xff]
        %v523 = vld [vmem:[%s0 + $0x210] sm:$0xff]
        %v524 = vld [vmem:[%s0 + $0x218] sm:$0xff]
        %v525 = vld [vmem:[%s0 + $0x220] sm:$0xff]
        %v526 = vld [vmem:[%s0 + $0x228] sm:$0xff]
        %v527 = vld [vmem:[%s0 + $0x230] sm:$0xff]
        %v528 = vld [vmem:[%s0 + $0x238] sm:$0xff]
        %v529 = vld [vmem:[%s0 + $0x240] sm:$0xff]
        %v530 = vld [vmem:[%s0 + $0x248] sm:$0xff]
        %v531 = vld [vmem:[%s0 + $0x250] sm:$0xff]
        %v532 = vld [vmem:[%s0 + $0x258] sm:$0xff]
        %v533 = vld [vmem:[%s0 + $0x260] sm:$0xff]
        %v534 = vld [vmem:[%s0 + $0x268] sm:$0xff]
        %v535 = vld [vmem:[%s0 + $0x270] sm:$0xff]
        %v536 = vld [vmem:[%s0 + $0x278] sm:$0xff]
        %v537 = vld [vmem:[%s0 + $0x280] sm:$0xff]
        %v538 = vld [vmem:[%s0 + $0x288] sm:$0xff]
        %v539 = vld [vmem:[%s0 + $0x290] sm:$0xff]
        %v540 = vld [vmem:[%s0 + $0x298] sm:$0xff]
        %v541 = vld [vmem:[%s0 + $0x2a0] sm:$0xff]
        %v542 = vld [vmem:[%s0 + $0x2a8] sm:$0xff]
        %v543 = vld [vmem:[%s0 + $0x2b0] sm:$0xff]
        %v544 = vld [vmem:[%s0 + $0x2b8] sm:$0xff]
        %v545 = vld [vmem:[%s0 + $0x2c0] sm:$0xff]
        %v546 = vld [vmem:[%s0 + $0x2c8] sm:$0xff]
        %v547 = vld [vmem:[%s0 + $0x2d0] sm:$0xff]
        %v548 = vld [vmem:[%s0 + $0x2d8] sm:$0xff]
        %v549 = vld [vmem:[%s0 + $0x2e0] sm:$0xff]
        %v550 = vld [vmem:[%s0 + $0x2e8] sm:$0xff]
        %v551 = vld [vmem:[%s0 + $0x2f0] sm:$0xff]
        %v552 = vld [vmem:[%s0 + $0x2f8] sm:$0xff]
        %v553 = vld [vmem:[%s0 + $0x300] sm:$0xff]
        %v554 = vld [vmem:[%s0 + $0x308] sm:$0xff]
        %v555 = vld [vmem:[%s0 + $0x310] sm:$0xff]
        %v556 = vld [vmem:[%s0 + $0x318] sm:$0xff]
        %v557 = vld [vmem:[%s0 + $0x320] sm:$0xff]
        %v558 = vld [vmem:[%s0 + $0x328] sm:$0xff]
        %v559 = vld [vmem:[%s0 + $0x330] sm:$0xff]
        %v560 = vld [vmem:[%s0 + $0x338] sm:$0xff]
        %v561 = vld [vmem:[%s0 + $0x340] sm:$0xff]
        %v562 = vld [vmem:[%s0 + $0x348] sm:$0xff]
        %v563 = vld [vmem:[%s0 + $0x350] sm:$0xff]
        %v564 = vld [vmem:[%s0 + $0x358] sm:$0xff]
        %v565 = vld [vmem:[%s0 + $0x360] sm:$0xff]
        %v566 = vld [vmem:[%s0 + $0x368] sm:$0xff]
        %v567 = vld [vmem:[%s0 + $0x370] sm:$0xff]
        %v568 = vld [vmem:[%s0 + $0x378] sm:$0xff]
        %v569 = vld [vmem:[%s0 + $0x380] sm:$0xff]
        %v570 = vld [vmem:[%s0 + $0x388] sm:$0xff]
        %v571 = vld [vmem:[%s0 + $0x390] sm:$0xff]
        %v572 = vld [vmem:[%s0 + $0x398] sm:$0xff]
        %v573 = vld [vmem:[%s0 + $0x3a0] sm:$0xff]
        %v574 = vld [vmem:[%s0 + $0x3a8] sm:$0xff]
        %v575 = vld [vmem:[%s0 + $0x3b0] sm:$0xff]
        %v576 = vld [vmem:[%s0 + $0x3b8] sm:$0xff]
        %v577 = vld [vmem:[%s0 + $0x3c0] sm:$0xff]
        %v578 = vld [vmem:[%s0 + $0x3c8] sm:$0xff]
        %v579 = vld [vmem:[%s0 + $0x3d0] sm:$0xff]
        %v580 = vld [vmem:[%s0 + $0x3d8] sm:$0xff]
        %v581 = vld [vmem:[%s0 + $0x3e0] sm:$0xff]
        %v582 = vld [vmem:[%s0 + $0x3e8] sm:$0xff]
        %v583 = vld [vmem:[%s0 + $0x3f0] sm:$0xff]
        %v584 = vld [vmem:[%s0 + $0x3f8] sm:$0xff]
        %v585 = vld [vmem:[%s0 + $0x400] sm:$0xff]
        %v586 = vld [vmem:[%s0 + $0x408] sm:$0xff]
        %v587 = vld [vmem:[%s0 + $0x410] sm:$0xff]
        %v588 = vld [vmem:[%s0 + $0x418] sm:$0xff]
        %v589 = vld [vmem:[%s0 + $0x420] sm:$0xff]
        %v590 = vld [vmem:[%s0 + $0x428] sm:$0xff]
        %v591 = vld [vmem:[%s0 + $0x430] sm:$0xff]
        %v592 = vld [vmem:[%s0 + $0x438] sm:$0xff]
        %v593 = vld [vmem:[%s0 + $0x440] sm:$0xff]
        %v594 = vld [vmem:[%s0 + $0x448] sm:$0xff]
        %v595 = vld [vmem:[%s0 + $0x450] sm:$0xff]
        %v596 = vld [vmem:[%s0 + $0x458] sm:$0xff]
        %v597 = vld [vmem:[%s0 + $0x460] sm:$0xff]
        %v598 = vld [vmem:[%s0 + $0x468] sm:$0xff]
        %v599 = vld [vmem:[%s0 + $0x470] sm:$0xff]
        %v600 = vld [vmem:[%s0 + $0x478] sm:$0xff]
        %vm601 = vcmask 523264
        %v603 = vsel %vm601, %v376, 0
        %v606 = vsel %vm601, %v381, 0
        %v609 = vsel %vm601, %v386, 0
        %v612 = vsel %vm601, %v391, 0
        %v615 = vsel %vm601, %v396, 0
        %v618 = vsel %vm601, %v401, 0
        %v621 = vsel %vm601, %v406, 0
        %v624 = vsel %vm601, %v411, 0
        %v627 = vsel %vm601, %v416, 0
        %v630 = vsel %vm601, %v421, 0
        %v633 = vsel %vm601, %v426, 0
        %v636 = vsel %vm601, %v431, 0
        %v639 = vsel %vm601, %v436, 0
        %v642 = vsel %vm601, %v441, 0
        %v645 = vsel %vm601, %v446, 0
        %v648 = vsel %vm601, %v451, 0
        %v651 = vsel %vm601, %v456, 0
        %653 = vmatprep.subr.mxu0 %v458
        %654 = vmatpush1.msra.mxu0 %v457
        %655 = vmatprep.subr.mxu0 %v460
        %656 = vmatpush1.msra.mxu0 %v459
        %657 = vmatprep.subr.mxu0 %v462
        %658 = vmatpush1.msra.mxu0 %v461
        %659 = vmatprep.subr.mxu0 %v464
        %660 = vmatpush1.msra.mxu0 %v463
        %661 = vmatprep.subr.mxu0 %v466
        %662 = vmatpush1.msra.mxu0 %v465
        %663 = vmatprep.subr.mxu0 %v468
        %664 = vmatpush1.msra.mxu0 %v467
        %665 = vmatprep.subr.mxu0 %v470
        %666 = vmatpush1.msra.mxu0 %v469
        %667 = vmatprep.subr.mxu0 %v472
        %668 = vmatpush1.msra.mxu0 %v471
        %669 = vmatprep.subr.mxu0 %v474
        %670 = vmatpush1.msra.mxu0 %v473
        %671 = vmatprep.subr.mxu0 %v476
        %672 = vmatpush1.msra.mxu0 %v475
        %673 = vmatprep.subr.mxu0 %v478
        %674 = vmatpush1.msra.mxu0 %v477
        %675 = vmatprep.subr.mxu0 %v480
        %676 = vmatpush1.msra.mxu0 %v479
        %677 = vmatprep.subr.mxu0 %v482
        %678 = vmatpush1.msra.mxu0 %v481
        %679 = vmatprep.subr.mxu0 %v484
        %680 = vmatpush1.msra.mxu0 %v483
        %681 = vmatprep.subr.mxu0 %v486
        %682 = vmatpush1.msra.mxu0 %v485
        %683 = vmatprep.subr.mxu0 %v488
        %684 = vmatpush1.msra.mxu0 %v487
        %685 = vmatprep.subr.mxu0 %v490
        %686 = vmatpush1.msra.mxu0 %v489
        %687 = vmatprep.subr.mxu0 %v492
        %688 = vmatpush1.msra.mxu0 %v491
        %689 = vmatprep.subr.mxu0 %v494
        %690 = vmatpush1.msra.mxu0 %v493
        %691 = vmatprep.subr.mxu0 %v496
        %692 = vmatpush1.msra.mxu0 %v495
        %693 = vmatprep.subr.mxu0 %v498
        %694 = vmatpush1.msra.mxu0 %v497
        %695 = vmatprep.subr.mxu0 %v500
        %696 = vmatpush1.msra.mxu0 %v499
        %697 = vmatprep.subr.mxu0 %v502
        %698 = vmatpush1.msra.mxu0 %v501
        %699 = vmatprep.subr.mxu0 %v504
        %700 = vmatpush1.msra.mxu0 %v503
        %701 = vmatprep.subr.mxu0 %v506
        %702 = vmatpush1.msra.mxu0 %v505
        %703 = vmatprep.subr.mxu0 %v508
        %704 = vmatpush1.msra.mxu0 %v507
        %705 = vmatprep.subr.mxu0 %v510
        %706 = vmatpush1.msra.mxu0 %v509
        %707 = vmatprep.subr.mxu0 %v512
        %708 = vmatpush1.msra.mxu0 %v511
        %709 = vmatprep.subr.mxu0 %v514
        %710 = vmatpush1.msra.mxu0 %v513
        %711 = vmatprep.subr.mxu0 %v516
        %712 = vmatpush1.msra.mxu0 %v515
        %713 = vmatprep.subr.mxu0 %v518
        %714 = vmatpush1.msra.mxu0 %v517
        %715 = vmatprep.subr.mxu0 %v520
        %716 = vmatpush1.msra.mxu0 %v519
        %717 = vmatprep.mubr.f32.mxu0 %v373
        %718 = vmatmul.mubr.f32.gmra.mrb[0].mxu0 %v372
        %v719 = vpop.f32.mrb[0].mxu0
        %v720 = vadd.f32 0.0, %v719
        %v721 = vpop.f32.mrb[0].mxu0
        %v722 = vadd.f32 0.0, %v721
        %723 = vmatprep.mubr.f32.mxu0 %v378
        %724 = vmatmul.mubr.f32.gmra.mrb[0].mxu0 %v377
        %v725 = vpop.f32.mrb[0].mxu0
        %v726 = vadd.f32 0.0, %v725
        %v727 = vpop.f32.mrb[0].mxu0
        %v728 = vadd.f32 0.0, %v727
        %729 = vmatprep.mubr.f32.mxu0 %v383
        %730 = vmatmul.mubr.f32.gmra.mrb[0].mxu0 %v382
        %v731 = vpop.f32.mrb[0].mxu0
        %v732 = vadd.f32 0.0, %v731
        %v733 = vpop.f32.mrb[0].mxu0
        %v734 = vadd.f32 0.0, %v733
        %735 = vmatprep.mubr.f32.mxu0 %v388
        %736 = vmatmul.mubr.f32.gmra.mrb[0].mxu0 %v387
        %v737 = vpop.f32.mrb[0].mxu0
        %v738 = vadd.f32 0.0, %v737
        %v739 = vpop.f32.mrb[0].mxu0
        %v740 = vadd.f32 0.0, %v739
        %741 = vmatprep.mubr.f32.mxu0 %v393
        %742 = vmatmul.mubr.f32.gmra.mrb[0].mxu0 %v392
        %v743 = vpop.f32.mrb[0].mxu0
        %v744 = vadd.f32 0.0, %v743
        %v745 = vpop.f32.mrb[0].mxu0
        %v746 = vadd.f32 0.0, %v745
        %747 = vmatprep.mubr.f32.mxu0 %v398
        %748 = vmatmul.mubr.f32.gmra.mrb[0].mxu0 %v397
        %v749 = vpop.f32.mrb[0].mxu0
        %v750 = vadd.f32 0.0, %v749
        %v751 = vpop.f32.mrb[0].mxu0
        %v752 = vadd.f32 0.0, %v751
        %753 = vmatprep.mubr.f32.mxu0 %v403
        %754 = vmatmul.mubr.f32.gmra.mrb[0].mxu0 %v402
        %v755 = vpop.f32.mrb[0].mxu0
        %v756 = vadd.f32 0.0, %v755
        %v757 = vpop.f32.mrb[0].mxu0
        %v758 = vadd.f32 0.0, %v757
        %759 = vmatprep.mubr.f32.mxu0 %v408
        %760 = vmatmul.mubr.f32.gmra.mrb[0].mxu0 %v407
        %v761 = vpop.f32.mrb[0].mxu0
        %v762 = vadd.f32 0.0, %v761
        %v763 = vpop.f32.mrb[0].mxu0
        %v764 = vadd.f32 0.0, %v763
        %765 = vmatprep.mubr.f32.mxu0 %v413
        %766 = vmatmul.mubr.f32.gmra.mrb[0].mxu0 %v412
        %v767 = vpop.f32.mrb[0].mxu0
        %v768 = vadd.f32 0.0, %v767
        %v769 = vpop.f32.mrb[0].mxu0
        %v770 = vadd.f32 0.0, %v769
        %771 = vmatprep.mubr.f32.mxu0 %v418
        %772 = vmatmul.mubr.f32.gmra.mrb[0].mxu0 %v417
        %v773 = vpop.f32.mrb[0].mxu0
        %v774 = vadd.f32 0.0, %v773
        %v775 = vpop.f32.mrb[0].mxu0
        %v776 = vadd.f32 0.0, %v775
        %777 = vmatprep.mubr.f32.mxu0 %v423
        %778 = vmatmul.mubr.f32.gmra.mrb[0].mxu0 %v422
        %v779 = vpop.f32.mrb[0].mxu0
        %v780 = vadd.f32 0.0, %v779
        %v781 = vpop.f32.mrb[0].mxu0
        %v782 = vadd.f32 0.0, %v781
        %783 = vmatprep.mubr.f32.mxu0 %v428
        %784 = vmatmul.mubr.f32.gmra.mrb[0].mxu0 %v427
        %v785 = vpop.f32.mrb[0].mxu0
        %v786 = vadd.f32 0.0, %v785
        %v787 = vpop.f32.mrb[0].mxu0
        %v788 = vadd.f32 0.0, %v787
        %789 = vmatprep.mubr.f32.mxu0 %v433
        %790 = vmatmul.mubr.f32.gmra.mrb[0].mxu0 %v432
        %v791 = vpop.f32.mrb[0].mxu0
        %v792 = vadd.f32 0.0, %v791
        %v793 = vpop.f32.mrb[0].mxu0
        %v794 = vadd.f32 0.0, %v793
        %795 = vmatprep.mubr.f32.mxu0 %v438
        %796 = vmatmul.mubr.f32.gmra.mrb[0].mxu0 %v437
        %v797 = vpop.f32.mrb[0].mxu0
        %v798 = vadd.f32 0.0, %v797
        %v799 = vpop.f32.mrb[0].mxu0
        %v800 = vadd.f32 0.0, %v799
        %801 = vmatprep.mubr.f32.mxu0 %v443
        %802 = vmatmul.mubr.f32.gmra.mrb[0].mxu0 %v442
        %v803 = vpop.f32.mrb[0].mxu0
        %v804 = vadd.f32 0.0, %v803
        %v805 = vpop.f32.mrb[0].mxu0
        %v806 = vadd.f32 0.0, %v805
        %807 = vmatprep.mubr.f32.mxu0 %v448
        %808 = vmatmul.mubr.f32.gmra.mrb[0].mxu0 %v447
        %v809 = vpop.f32.mrb[0].mxu0
        %v810 = vadd.f32 0.0, %v809
        %v811 = vpop.f32.mrb[0].mxu0
        %v812 = vadd.f32 0.0, %v811
        %813 = vmatprep.mubr.f32.mxu0 %v453
        %814 = vmatmul.mubr.f32.gmra.mrb[0].mxu0 %v452
        %v815 = vpop.f32.mrb[0].mxu0
        %v816 = vadd.f32 0.0, %v815
        %v817 = vpop.f32.mrb[0].mxu0
        %v818 = vadd.f32 0.0, %v817
        %819 = vdwg.mxu0
        %820 = vmatprep.subr.mxu0 %v522
        %821 = vmatpush1.msra.mxu0 %v521
        %822 = vmatprep.subr.mxu0 %v524
        %823 = vmatpush1.msra.mxu0 %v523
        %824 = vmatprep.subr.mxu0 %v526
        %825 = vmatpush1.msra.mxu0 %v525
        %826 = vmatprep.subr.mxu0 %v528
        %827 = vmatpush1.msra.mxu0 %v527
        %828 = vmatprep.subr.mxu0 %v530
        %829 = vmatpush1.msra.mxu0 %v529
        %830 = vmatprep.subr.mxu0 %v532
        %831 = vmatpush1.msra.mxu0 %v531
        %832 = vmatprep.subr.mxu0 %v534
        %833 = vmatpush1.msra.mxu0 %v533
        %834 = vmatprep.subr.mxu0 %v536
        %835 = vmatpush1.msra.mxu0 %v535
        %836 = vmatprep.subr.mxu0 %v538
        %837 = vmatpush1.msra.mxu0 %v537
        %838 = vmatprep.subr.mxu0 %v540
        %839 = vmatpush1.msra.mxu0 %v539
        %840 = vmatprep.subr.mxu0 %v542
        %841 = vmatpush1.msra.mxu0 %v541
        %842 = vmatprep.subr.mxu0 %v544
        %843 = vmatpush1.msra.mxu0 %v543
        %844 = vmatprep.subr.mxu0 %v546
        %845 = vmatpush1.msra.mxu0 %v545
        %846 = vmatprep.subr.mxu0 %v548
        %847 = vmatpush1.msra.mxu0 %v547
        %848 = vmatprep.subr.mxu0 %v550
        %849 = vmatpush1.msra.mxu0 %v549
        %850 = vmatprep.subr.mxu0 %v552
        %851 = vmatpush1.msra.mxu0 %v551
        %852 = vmatprep.subr.mxu0 %v554
        %853 = vmatpush1.msra.mxu0 %v553
        %854 = vmatprep.subr.mxu0 %v556
        %855 = vmatpush1.msra.mxu0 %v555
        %856 = vmatprep.subr.mxu0 %v558
        %857 = vmatpush1.msra.mxu0 %v557
        %858 = vmatprep.subr.mxu0 %v560
        %859 = vmatpush1.msra.mxu0 %v559
        %860 = vmatprep.subr.mxu0 %v562
        %861 = vmatpush1.msra.mxu0 %v561
        %862 = vmatprep.subr.mxu0 %v564
        %863 = vmatpush1.msra.mxu0 %v563
        %864 = vmatprep.subr.mxu0 %v566
        %865 = vmatpush1.msra.mxu0 %v565
        %866 = vmatprep.subr.mxu0 %v568
        %867 = vmatpush1.msra.mxu0 %v567
        %868 = vmatprep.subr.mxu0 %v570
        %869 = vmatpush1.msra.mxu0 %v569
        %870 = vmatprep.subr.mxu0 %v572
        %871 = vmatpush1.msra.mxu0 %v571
        %872 = vmatprep.subr.mxu0 %v574
        %873 = vmatpush1.msra.mxu0 %v573
        %874 = vmatprep.subr.mxu0 %v576
        %875 = vmatpush1.msra.mxu0 %v575
        %876 = vmatprep.subr.mxu0 %v578
        %877 = vmatpush1.msra.mxu0 %v577
        %878 = vmatprep.subr.mxu0 %v580
        %879 = vmatpush1.msra.mxu0 %v579
        %880 = vmatprep.subr.mxu0 %v582
        %881 = vmatpush1.msra.mxu0 %v581
        %882 = vmatprep.subr.mxu0 %v584
        %883 = vmatpush1.msra.mxu0 %v583
        %884 = vmatprep.mubr.f32.mxu0 %v375
        %885 = vmatmul.mubr.f32.gmra.mrb[0].mxu0 %v374
        %v886 = vpop.f32.mrb[0].mxu0
        %v887 = vadd.f32 %v720, %v886
        %v888 = vpop.f32.mrb[0].mxu0
        %v889 = vadd.f32 %v722, %v888
        %890 = vmatprep.mubr.f32.mxu0 %v380
        %891 = vmatmul.mubr.f32.gmra.mrb[0].mxu0 %v379
        %v892 = vpop.f32.mrb[0].mxu0
        %v893 = vadd.f32 %v726, %v892
        %v894 = vpop.f32.mrb[0].mxu0
        %v895 = vadd.f32 %v728, %v894
        %896 = vmatprep.mubr.f32.mxu0 %v385
        %897 = vmatmul.mubr.f32.gmra.mrb[0].mxu0 %v384
        %v898 = vpop.f32.mrb[0].mxu0
        %v899 = vadd.f32 %v732, %v898
        %v900 = vpop.f32.mrb[0].mxu0
        %v901 = vadd.f32 %v734, %v900
        %902 = vmatprep.mubr.f32.mxu0 %v390
        %903 = vmatmul.mubr.f32.gmra.mrb[0].mxu0 %v389
        %v904 = vpop.f32.mrb[0].mxu0
        %v905 = vadd.f32 %v738, %v904
        %v906 = vpop.f32.mrb[0].mxu0
        %v907 = vadd.f32 %v740, %v906
        %908 = vmatprep.mubr.f32.mxu0 %v395
        %909 = vmatmul.mubr.f32.gmra.mrb[0].mxu0 %v394
        %v910 = vpop.f32.mrb[0].mxu0
        %v911 = vadd.f32 %v744, %v910
        %v912 = vpop.f32.mrb[0].mxu0
        %v913 = vadd.f32 %v746, %v912
        %914 = vmatprep.mubr.f32.mxu0 %v400
        %915 = vmatmul.mubr.f32.gmra.mrb[0].mxu0 %v399
        %v916 = vpop.f32.mrb[0].mxu0
        %v917 = vadd.f32 %v750, %v916
        %v918 = vpop.f32.mrb[0].mxu0
        %v919 = vadd.f32 %v752, %v918
        %920 = vmatprep.mubr.f32.mxu0 %v405
        %921 = vmatmul.mubr.f32.gmra.mrb[0].mxu0 %v404
        %v922 = vpop.f32.mrb[0].mxu0
        %v923 = vadd.f32 %v756, %v922
        %v924 = vpop.f32.mrb[0].mxu0
        %v925 = vadd.f32 %v758, %v924
        %926 = vmatprep.mubr.f32.mxu0 %v410
        %927 = vmatmul.mubr.f32.gmra.mrb[0].mxu0 %v409
        %v928 = vpop.f32.mrb[0].mxu0
        %v929 = vadd.f32 %v762, %v928
        %v930 = vpop.f32.mrb[0].mxu0
        %v931 = vadd.f32 %v764, %v930
        %932 = vmatprep.mubr.f32.mxu0 %v415
        %933 = vmatmul.mubr.f32.gmra.mrb[0].mxu0 %v414
        %v934 = vpop.f32.mrb[0].mxu0
        %v935 = vadd.f32 %v768, %v934
        %v936 = vpop.f32.mrb[0].mxu0
        %v937 = vadd.f32 %v770, %v936
        %938 = vmatprep.mubr.f32.mxu0 %v420
        %939 = vmatmul.mubr.f32.gmra.mrb[0].mxu0 %v419
        %v940 = vpop.f32.mrb[0].mxu0
        %v941 = vadd.f32 %v774, %v940
        %v942 = vpop.f32.mrb[0].mxu0
        %v943 = vadd.f32 %v776, %v942
        %944 = vmatprep.mubr.f32.mxu0 %v425
        %945 = vmatmul.mubr.f32.gmra.mrb[0].mxu0 %v424
        %v946 = vpop.f32.mrb[0].mxu0
        %v947 = vadd.f32 %v780, %v946
        %v948 = vpop.f32.mrb[0].mxu0
        %v949 = vadd.f32 %v782, %v948
        %950 = vmatprep.mubr.f32.mxu0 %v430
        %951 = vmatmul.mubr.f32.gmra.mrb[0].mxu0 %v429
        %v952 = vpop.f32.mrb[0].mxu0
        %v953 = vadd.f32 %v786, %v952
        %v954 = vpop.f32.mrb[0].mxu0
        %v955 = vadd.f32 %v788, %v954
        %956 = vmatprep.mubr.f32.mxu0 %v435
        %957 = vmatmul.mubr.f32.gmra.mrb[0].mxu0 %v434
        %v958 = vpop.f32.mrb[0].mxu0
        %v959 = vadd.f32 %v792, %v958
        %v960 = vpop.f32.mrb[0].mxu0
        %v961 = vadd.f32 %v794, %v960
        %962 = vmatprep.mubr.f32.mxu0 %v440
        %963 = vmatmul.mubr.f32.gmra.mrb[0].mxu0 %v439
        %v964 = vpop.f32.mrb[0].mxu0
        %v965 = vadd.f32 %v798, %v964
        %v966 = vpop.f32.mrb[0].mxu0
        %v967 = vadd.f32 %v800, %v966
        %968 = vmatprep.mubr.f32.mxu0 %v445
        %969 = vmatmul.mubr.f32.gmra.mrb[0].mxu0 %v444
        %v970 = vpop.f32.mrb[0].mxu0
        %v971 = vadd.f32 %v804, %v970
        %v972 = vpop.f32.mrb[0].mxu0
        %v973 = vadd.f32 %v806, %v972
        %974 = vmatprep.mubr.f32.mxu0 %v450
        %975 = vmatmul.mubr.f32.gmra.mrb[0].mxu0 %v449
        %v976 = vpop.f32.mrb[0].mxu0
        %v977 = vadd.f32 %v810, %v976
        %v978 = vpop.f32.mrb[0].mxu0
        %v979 = vadd.f32 %v812, %v978
        %980 = vmatprep.mubr.f32.mxu0 %v455
        %981 = vmatmul.mubr.f32.gmra.mrb[0].mxu0 %v454
        %v982 = vpop.f32.mrb[0].mxu0
        %v983 = vadd.f32 %v816, %v982
        %v984 = vpop.f32.mrb[0].mxu0
        %v985 = vadd.f32 %v818, %v984
        %986 = vdwg.mxu0
        %987 = vmatprep.subr.mxu0 %v586
        %988 = vmatpush1.msra.mxu0 %v585
        %989 = vmatprep.subr.mxu0 %v588
        %990 = vmatpush1.msra.mxu0 %v587
        %991 = vmatprep.subr.mxu0 %v590
        %992 = vmatpush1.msra.mxu0 %v589
        %993 = vmatprep.subr.mxu0 %v592
        %994 = vmatpush1.msra.mxu0 %v591
        %995 = vmatprep.subr.mxu0 %v594
        %996 = vmatpush1.msra.mxu0 %v593
        %997 = vmatprep.subr.mxu0 %v596
        %998 = vmatpush1.msra.mxu0 %v595
        %999 = vmatprep.subr.mxu0 %v598
        %1000 = vmatpush1.msra.mxu0 %v597
        %1001 = vmatprep.subr.mxu0 %v600
        %1002 = vmatpush1.msra.mxu0 %v599
        %1003 = vmatprep.subr.mxu0 0.0
        %1004 = vmatpush1.msra.mxu0 0.0
        %1005 = vmatprep.subr.mxu0 0.0
        %1006 = vmatpush1.msra.mxu0 0.0
        %1007 = vmatprep.subr.mxu0 0.0
        %1008 = vmatpush1.msra.mxu0 0.0
        %1009 = vmatprep.subr.mxu0 0.0
        %1010 = vmatpush1.msra.mxu0 0.0
        %1011 = vmatprep.subr.mxu0 0.0
        %1012 = vmatpush1.msra.mxu0 0.0
        %1013 = vmatprep.subr.mxu0 0.0
        %1014 = vmatpush1.msra.mxu0 0.0
        %1015 = vmatprep.subr.mxu0 0.0
        %1016 = vmatpush1.msra.mxu0 0.0
        %1017 = vmatprep.subr.mxu0 0.0
        %1018 = vmatpush1.msra.mxu0 0.0
        %1019 = vmatprep.subr.mxu0 0.0
        %1020 = vmatpush1.msra.mxu0 0.0
        %1021 = vmatprep.subr.mxu0 0.0
        %1022 = vmatpush1.msra.mxu0 0.0
        %1023 = vmatprep.subr.mxu0 0.0
        %1024 = vmatpush1.msra.mxu0 0.0
        %1025 = vmatprep.subr.mxu0 0.0
        %1026 = vmatpush1.msra.mxu0 0.0
        %1027 = vmatprep.subr.mxu0 0.0
        %1028 = vmatpush1.msra.mxu0 0.0
        %1029 = vmatprep.subr.mxu0 0.0
        %1030 = vmatpush1.msra.mxu0 0.0
        %1031 = vmatprep.subr.mxu0 0.0
        %1032 = vmatpush1.msra.mxu0 0.0
        %1033 = vmatprep.subr.mxu0 0.0
        %1034 = vmatpush1.msra.mxu0 0.0
        %1035 = vmatprep.subr.mxu0 0.0
        %1036 = vmatpush1.msra.mxu0 0.0
        %1037 = vmatprep.subr.mxu0 0.0
        %1038 = vmatpush1.msra.mxu0 0.0
        %1039 = vmatprep.subr.mxu0 0.0
        %1040 = vmatpush1.msra.mxu0 0.0
        %1041 = vmatprep.subr.mxu0 0.0
        %1042 = vmatpush1.msra.mxu0 0.0
        %1043 = vmatprep.subr.mxu0 0.0
        %1044 = vmatpush1.msra.mxu0 0.0
        %1045 = vmatprep.subr.mxu0 0.0
        %1046 = vmatpush1.msra.mxu0 0.0
        %1047 = vmatprep.subr.mxu0 0.0
        %1048 = vmatpush1.msra.mxu0 0.0
        %1049 = vmatprep.subr.mxu0 0.0
        %1050 = vmatpush1.msra.mxu0 0.0
        %1051 = vmatprep.mubr.f32.mxu0 0.0
        %1052 = vmatmul.mubr.f32.gmra.mrb[0].mxu0 %v603
        %v1053 = vpop.f32.mrb[0].mxu0
        %v1054 = vadd.f32 %v887, %v1053
        %v1055 = vpop.f32.mrb[0].mxu0
        %v1056 = vadd.f32 %v889, %v1055
        %1057 = vmatprep.mubr.f32.mxu0 0.0
        %1058 = vmatmul.mubr.f32.gmra.mrb[0].mxu0 %v606
        %v1059 = vpop.f32.mrb[0].mxu0
        %v1060 = vadd.f32 %v893, %v1059
        %v1061 = vpop.f32.mrb[0].mxu0
        %v1062 = vadd.f32 %v895, %v1061
        %1063 = vmatprep.mubr.f32.mxu0 0.0
        %1064 = vmatmul.mubr.f32.gmra.mrb[0].mxu0 %v609
        %v1065 = vpop.f32.mrb[0].mxu0
        %v1066 = vadd.f32 %v899, %v1065
        %v1067 = vpop.f32.mrb[0].mxu0
        %v1068 = vadd.f32 %v901, %v1067
        %1069 = vmatprep.mubr.f32.mxu0 0.0
        %1070 = vmatmul.mubr.f32.gmra.mrb[0].mxu0 %v612
        %v1071 = vpop.f32.mrb[0].mxu0
        %v1072 = vadd.f32 %v905, %v1071
        %v1073 = vpop.f32.mrb[0].mxu0
        %v1074 = vadd.f32 %v907, %v1073
        %1075 = vmatprep.mubr.f32.mxu0 0.0
        %1076 = vmatmul.mubr.f32.gmra.mrb[0].mxu0 %v615
        %v1077 = vpop.f32.mrb[0].mxu0
        %v1078 = vadd.f32 %v911, %v1077
        %v1079 = vpop.f32.mrb[0].mxu0
        %v1080 = vadd.f32 %v913, %v1079
        %1081 = vmatprep.mubr.f32.mxu0 0.0
        %1082 = vmatmul.mubr.f32.gmra.mrb[0].mxu0 %v618
        %v1083 = vpop.f32.mrb[0].mxu0
        %v1084 = vadd.f32 %v917, %v1083
        %v1085 = vpop.f32.mrb[0].mxu0
        %v1086 = vadd.f32 %v919, %v1085
        %1087 = vmatprep.mubr.f32.mxu0 0.0
        %1088 = vmatmul.mubr.f32.gmra.mrb[0].mxu0 %v621
        %v1089 = vpop.f32.mrb[0].mxu0
        %v1090 = vadd.f32 %v923, %v1089
        %v1091 = vpop.f32.mrb[0].mxu0
        %v1092 = vadd.f32 %v925, %v1091
        %1093 = vmatprep.mubr.f32.mxu0 0.0
        %1094 = vmatmul.mubr.f32.gmra.mrb[0].mxu0 %v624
        %v1095 = vpop.f32.mrb[0].mxu0
        %v1096 = vadd.f32 %v929, %v1095
        %v1097 = vpop.f32.mrb[0].mxu0
        %v1098 = vadd.f32 %v931, %v1097
        %1099 = vmatprep.mubr.f32.mxu0 0.0
        %1100 = vmatmul.mubr.f32.gmra.mrb[0].mxu0 %v627
        %v1101 = vpop.f32.mrb[0].mxu0
        %v1102 = vadd.f32 %v935, %v1101
        %v1103 = vpop.f32.mrb[0].mxu0
        %v1104 = vadd.f32 %v937, %v1103
        %1105 = vmatprep.mubr.f32.mxu0 0.0
        %1106 = vmatmul.mubr.f32.gmra.mrb[0].mxu0 %v630
        %v1107 = vpop.f32.mrb[0].mxu0
        %v1108 = vadd.f32 %v941, %v1107
        %v1109 = vpop.f32.mrb[0].mxu0
        %v1110 = vadd.f32 %v943, %v1109
        %1111 = vmatprep.mubr.f32.mxu0 0.0
        %1112 = vmatmul.mubr.f32.gmra.mrb[0].mxu0 %v633
        %v1113 = vpop.f32.mrb[0].mxu0
        %v1114 = vadd.f32 %v947, %v1113
        %v1115 = vpop.f32.mrb[0].mxu0
        %v1116 = vadd.f32 %v949, %v1115
        %1117 = vmatprep.mubr.f32.mxu0 0.0
        %1118 = vmatmul.mubr.f32.gmra.mrb[0].mxu0 %v636
        %v1119 = vpop.f32.mrb[0].mxu0
        %v1120 = vadd.f32 %v953, %v1119
        %v1121 = vpop.f32.mrb[0].mxu0
        %v1122 = vadd.f32 %v955, %v1121
        %1123 = vmatprep.mubr.f32.mxu0 0.0
        %1124 = vmatmul.mubr.f32.gmra.mrb[0].mxu0 %v639
        %v1125 = vpop.f32.mrb[0].mxu0
        %v1126 = vadd.f32 %v959, %v1125
        %v1127 = vpop.f32.mrb[0].mxu0
        %v1128 = vadd.f32 %v961, %v1127
        %1129 = vmatprep.mubr.f32.mxu0 0.0
        %1130 = vmatmul.mubr.f32.gmra.mrb[0].mxu0 %v642
        %v1131 = vpop.f32.mrb[0].mxu0
        %v1132 = vadd.f32 %v965, %v1131
        %v1133 = vpop.f32.mrb[0].mxu0
        %v1134 = vadd.f32 %v967, %v1133
        %1135 = vmatprep.mubr.f32.mxu0 0.0
        %1136 = vmatmul.mubr.f32.gmra.mrb[0].mxu0 %v645
        %v1137 = vpop.f32.mrb[0].mxu0
        %v1138 = vadd.f32 %v971, %v1137
        %v1139 = vpop.f32.mrb[0].mxu0
        %v1140 = vadd.f32 %v973, %v1139
        %1141 = vmatprep.mubr.f32.mxu0 0.0
        %1142 = vmatmul.mubr.f32.gmra.mrb[0].mxu0 %v648
        %v1143 = vpop.f32.mrb[0].mxu0
        %v1144 = vadd.f32 %v977, %v1143
        %v1145 = vpop.f32.mrb[0].mxu0
        %v1146 = vadd.f32 %v979, %v1145
        %1147 = vmatprep.mubr.f32.mxu0 0.0
        %1148 = vmatmul.mubr.f32.gmra.mrb[0].mxu0 %v651
        %v1149 = vpop.f32.mrb[0].mxu0
        %v1150 = vadd.f32 %v983, %v1149
        %v1151 = vpop.f32.mrb[0].mxu0
        %v1152 = vadd.f32 %v985, %v1151
        %1153 = vdwg.mxu0
        %vm1154 = vcmask 556032
        %v1155 = vsel %vm1154, %v1056, 0.0
        %v1156 = vadd.f32 %v1054, %v1155
        %1157 = vadd.xlane.f32.xlu0 %v1156
        %v1158 = vpop.xlane.xlu0 %1157
        %v1159 = vsel %vm1154, %v1062, 0.0
        %v1160 = vadd.f32 %v1060, %v1159
        %1161 = vadd.xlane.f32.xlu0 %v1160
        %v1162 = vpop.xlane.xlu0 %1161
        %v1163 = vsel %vm1154, %v1068, 0.0
        %v1164 = vadd.f32 %v1066, %v1163
        %1165 = vadd.xlane.f32.xlu0 %v1164
        %v1166 = vpop.xlane.xlu0 %1165
        %v1167 = vsel %vm1154, %v1074, 0.0
        %v1168 = vadd.f32 %v1072, %v1167
        %1169 = vadd.xlane.f32.xlu0 %v1168
        %v1170 = vpop.xlane.xlu0 %1169
        %v1171 = vsel %vm1154, %v1080, 0.0
        %v1172 = vadd.f32 %v1078, %v1171
        %1173 = vadd.xlane.f32.xlu0 %v1172
        %v1174 = vpop.xlane.xlu0 %1173
        %v1175 = vsel %vm1154, %v1086, 0.0
        %v1176 = vadd.f32 %v1084, %v1175
        %1177 = vadd.xlane.f32.xlu0 %v1176
        %v1178 = vpop.xlane.xlu0 %1177
        %v1179 = vsel %vm1154, %v1092, 0.0
        %v1180 = vadd.f32 %v1090, %v1179
        %1181 = vadd.xlane.f32.xlu0 %v1180
        %v1182 = vpop.xlane.xlu0 %1181
        %v1183 = vsel %vm1154, %v1098, 0.0
        %v1184 = vadd.f32 %v1096, %v1183
        %1185 = vadd.xlane.f32.xlu0 %v1184
        %v1186 = vpop.xlane.xlu0 %1185
        %v1187 = vsel %vm1154, %v1104, 0.0
        %v1188 = vadd.f32 %v1102, %v1187
        %1189 = vadd.xlane.f32.xlu0 %v1188
        %v1190 = vpop.xlane.xlu0 %1189
        %v1191 = vsel %vm1154, %v1110, 0.0
        %v1192 = vadd.f32 %v1108, %v1191
        %1193 = vadd.xlane.f32.xlu0 %v1192
        %v1194 = vpop.xlane.xlu0 %1193
        %v1195 = vsel %vm1154, %v1116, 0.0
        %v1196 = vadd.f32 %v1114, %v1195
        %1197 = vadd.xlane.f32.xlu0 %v1196
        %v1198 = vpop.xlane.xlu0 %1197
        %v1199 = vsel %vm1154, %v1122, 0.0
        %v1200 = vadd.f32 %v1120, %v1199
        %1201 = vadd.xlane.f32.xlu0 %v1200
        %v1202 = vpop.xlane.xlu0 %1201
        %v1203 = vsel %vm1154, %v1128, 0.0
        %v1204 = vadd.f32 %v1126, %v1203
        %1205 = vadd.xlane.f32.xlu0 %v1204
        %v1206 = vpop.xlane.xlu0 %1205
        %v1207 = vsel %vm1154, %v1134, 0.0
        %v1208 = vadd.f32 %v1132, %v1207
        %1209 = vadd.xlane.f32.xlu0 %v1208
        %v1210 = vpop.xlane.xlu0 %1209
        %v1211 = vsel %vm1154, %v1140, 0.0
        %v1212 = vadd.f32 %v1138, %v1211
        %1213 = vadd.xlane.f32.xlu0 %v1212
        %v1214 = vpop.xlane.xlu0 %1213
        %v1215 = vsel %vm1154, %v1146, 0.0
        %v1216 = vadd.f32 %v1144, %v1215
        %1217 = vadd.xlane.f32.xlu0 %v1216
        %v1218 = vpop.xlane.xlu0 %1217
        %v1219 = vsel %vm1154, %v1152, 0.0
        %v1220 = vadd.f32 %v1150, %v1219
        %1221 = vadd.xlane.f32.xlu0 %v1220
        %v1222 = vpop.xlane.xlu0 %1221
        %v1223 = vmul.f32 %v1158, 0.0051020407
        %v1224 = vmul.f32 %v1162, 0.0051020407
        %v1225 = vmul.f32 %v1166, 0.0051020407
        %v1226 = vmul.f32 %v1170, 0.0051020407
        %v1227 = vmul.f32 %v1174, 0.0051020407
        %v1228 = vmul.f32 %v1178, 0.0051020407
        %v1229 = vmul.f32 %v1182, 0.0051020407
        %v1230 = vmul.f32 %v1186, 0.0051020407
        %v1231 = vmul.f32 %v1190, 0.0051020407
        %v1232 = vmul.f32 %v1194, 0.0051020407
        %v1233 = vmul.f32 %v1198, 0.0051020407
        %v1234 = vmul.f32 %v1202, 0.0051020407
        %v1235 = vmul.f32 %v1206, 0.0051020407
        %v1236 = vmul.f32 %v1210, 0.0051020407
        %v1237 = vmul.f32 %v1214, 0.0051020407
        %v1238 = vmul.f32 %v1218, 0.0051020407
        %v1239 = vmul.f32 %v1222, 0.0051020407
        %v1240 = vsub.f32 %v1054, %v1223
        %v1241 = vsub.f32 %v1056, %v1223
        %v1242 = vsub.f32 %v1060, %v1224
        %v1243 = vsub.f32 %v1062, %v1224
        %v1244 = vsub.f32 %v1066, %v1225
        %v1245 = vsub.f32 %v1068, %v1225
        %v1246 = vsub.f32 %v1072, %v1226
        %v1247 = vsub.f32 %v1074, %v1226
        %v1248 = vsub.f32 %v1078, %v1227
        %v1249 = vsub.f32 %v1080, %v1227
        %v1250 = vsub.f32 %v1084, %v1228
        %v1251 = vsub.f32 %v1086, %v1228
        %v1252 = vsub.f32 %v1090, %v1229
        %v1253 = vsub.f32 %v1092, %v1229
        %v1254 = vsub.f32 %v1096, %v1230
        %v1255 = vsub.f32 %v1098, %v1230
        %v1256 = vsub.f32 %v1102, %v1231
        %v1257 = vsub.f32 %v1104, %v1231
        %v1258 = vsub.f32 %v1108, %v1232
        %v1259 = vsub.f32 %v1110, %v1232
        %v1260 = vsub.f32 %v1114, %v1233
        %v1261 = vsub.f32 %v1116, %v1233
        %v1262 = vsub.f32 %v1120, %v1234
        %v1263 = vsub.f32 %v1122, %v1234
        %v1264 = vsub.f32 %v1126, %v1235
        %v1265 = vsub.f32 %v1128, %v1235
        %v1266 = vsub.f32 %v1132, %v1236
        %v1267 = vsub.f32 %v1134, %v1236
        %v1268 = vsub.f32 %v1138, %v1237
        %v1269 = vsub.f32 %v1140, %v1237
        %v1270 = vsub.f32 %v1144, %v1238
        %v1271 = vsub.f32 %v1146, %v1238
        %v1272 = vsub.f32 %v1150, %v1239
        %v1273 = vsub.f32 %v1152, %v1239
        %v1274 = vmul.f32 %v1240, %v1240
        %v1275 = vmul.f32 %v1241, %v1241
        %v1276 = vmul.f32 %v1242, %v1242
        %v1277 = vmul.f32 %v1243, %v1243
        %v1278 = vmul.f32 %v1244, %v1244
        %v1279 = vmul.f32 %v1245, %v1245
        %v1280 = vmul.f32 %v1246, %v1246
        %v1281 = vmul.f32 %v1247, %v1247
        %v1282 = vmul.f32 %v1248, %v1248
        %v1283 = vmul.f32 %v1249, %v1249
        %v1284 = vmul.f32 %v1250, %v1250
        %v1285 = vmul.f32 %v1251, %v1251
        %v1286 = vmul.f32 %v1252, %v1252
        %v1287 = vmul.f32 %v1253, %v1253
        %v1288 = vmul.f32 %v1254, %v1254
        %v1289 = vmul.f32 %v1255, %v1255
        %v1290 = vmul.f32 %v1256, %v1256
        %v1291 = vmul.f32 %v1257, %v1257
        %v1292 = vmul.f32 %v1258, %v1258
        %v1293 = vmul.f32 %v1259, %v1259
        %v1294 = vmul.f32 %v1260, %v1260
        %v1295 = vmul.f32 %v1261, %v1261
        %v1296 = vmul.f32 %v1262, %v1262
        %v1297 = vmul.f32 %v1263, %v1263
        %v1298 = vmul.f32 %v1264, %v1264
        %v1299 = vmul.f32 %v1265, %v1265
        %v1300 = vmul.f32 %v1266, %v1266
        %v1301 = vmul.f32 %v1267, %v1267
        %v1302 = vmul.f32 %v1268, %v1268
        %v1303 = vmul.f32 %v1269, %v1269
        %v1304 = vmul.f32 %v1270, %v1270
        %v1305 = vmul.f32 %v1271, %v1271
        %v1306 = vmul.f32 %v1272, %v1272
        %v1307 = vmul.f32 %v1273, %v1273
        %v1308 = vsel %vm1154, %v1275, 0.0
        %v1309 = vadd.f32 %v1274, %v1308
        %1310 = vadd.xlane.f32.xlu0 %v1309
        %v1311 = vpop.xlane.xlu0 %1310
        %v1312 = vsel %vm1154, %v1277, 0.0
        %v1313 = vadd.f32 %v1276, %v1312
        %1314 = vadd.xlane.f32.xlu0 %v1313
        %v1315 = vpop.xlane.xlu0 %1314
        %v1316 = vsel %vm1154, %v1279, 0.0
        %v1317 = vadd.f32 %v1278, %v1316
        %1318 = vadd.xlane.f32.xlu0 %v1317
        %v1319 = vpop.xlane.xlu0 %1318
        %v1320 = vsel %vm1154, %v1281, 0.0
        %v1321 = vadd.f32 %v1280, %v1320
        %1322 = vadd.xlane.f32.xlu0 %v1321
        %v1323 = vpop.xlane.xlu0 %1322
        %v1324 = vsel %vm1154, %v1283, 0.0
        %v1325 = vadd.f32 %v1282, %v1324
        %1326 = vadd.xlane.f32.xlu0 %v1325
        %v1327 = vpop.xlane.xlu0 %1326
        %v1328 = vsel %vm1154, %v1285, 0.0
        %v1329 = vadd.f32 %v1284, %v1328
        %1330 = vadd.xlane.f32.xlu0 %v1329
        %v1331 = vpop.xlane.xlu0 %1330
        %v1332 = vsel %vm1154, %v1287, 0.0
        %v1333 = vadd.f32 %v1286, %v1332
        %1334 = vadd.xlane.f32.xlu0 %v1333
        %v1335 = vpop.xlane.xlu0 %1334
        %v1336 = vsel %vm1154, %v1289, 0.0
        %v1337 = vadd.f32 %v1288, %v1336
        %1338 = vadd.xlane.f32.xlu0 %v1337
        %v1339 = vpop.xlane.xlu0 %1338
        %v1340 = vsel %vm1154, %v1291, 0.0
        %v1341 = vadd.f32 %v1290, %v1340
        %1342 = vadd.xlane.f32.xlu0 %v1341
        %v1343 = vpop.xlane.xlu0 %1342
        %v1344 = vsel %vm1154, %v1293, 0.0
        %v1345 = vadd.f32 %v1292, %v1344
        %1346 = vadd.xlane.f32.xlu0 %v1345
        %v1347 = vpop.xlane.xlu0 %1346
        %v1348 = vsel %vm1154, %v1295, 0.0
        %v1349 = vadd.f32 %v1294, %v1348
        %1350 = vadd.xlane.f32.xlu0 %v1349
        %v1351 = vpop.xlane.xlu0 %1350
        %v1352 = vsel %vm1154, %v1297, 0.0
        %v1353 = vadd.f32 %v1296, %v1352
        %1354 = vadd.xlane.f32.xlu0 %v1353
        %v1355 = vpop.xlane.xlu0 %1354
        %v1356 = vsel %vm1154, %v1299, 0.0
        %v1357 = vadd.f32 %v1298, %v1356
        %1358 = vadd.xlane.f32.xlu0 %v1357
        %v1359 = vpop.xlane.xlu0 %1358
        %v1360 = vsel %vm1154, %v1301, 0.0
        %v1361 = vadd.f32 %v1300, %v1360
        %1362 = vadd.xlane.f32.xlu0 %v1361
        %v1363 = vpop.xlane.xlu0 %1362
        %v1364 = vsel %vm1154, %v1303, 0.0
        %v1365 = vadd.f32 %v1302, %v1364
        %1366 = vadd.xlane.f32.xlu0 %v1365
        %v1367 = vpop.xlane.xlu0 %1366
        %v1368 = vsel %vm1154, %v1305, 0.0
        %v1369 = vadd.f32 %v1304, %v1368
        %1370 = vadd.xlane.f32.xlu0 %v1369
        %v1371 = vpop.xlane.xlu0 %1370
        %v1372 = vsel %vm1154, %v1307, 0.0
        %v1373 = vadd.f32 %v1306, %v1372
        %1374 = vadd.xlane.f32.xlu0 %v1373
        %v1375 = vpop.xlane.xlu0 %1374
        %v1376 = vmul.f32 %v1311, 0.0051020407
        %v1377 = vmul.f32 %v1315, 0.0051020407
        %v1378 = vmul.f32 %v1319, 0.0051020407
        %v1379 = vmul.f32 %v1323, 0.0051020407
        %v1380 = vmul.f32 %v1327, 0.0051020407
        %v1381 = vmul.f32 %v1331, 0.0051020407
        %v1382 = vmul.f32 %v1335, 0.0051020407
        %v1383 = vmul.f32 %v1339, 0.0051020407
        %v1384 = vmul.f32 %v1343, 0.0051020407
        %v1385 = vmul.f32 %v1347, 0.0051020407
        %v1386 = vmul.f32 %v1351, 0.0051020407
        %v1387 = vmul.f32 %v1355, 0.0051020407
        %v1388 = vmul.f32 %v1359, 0.0051020407
        %v1389 = vmul.f32 %v1363, 0.0051020407
        %v1390 = vmul.f32 %v1367, 0.0051020407
        %v1391 = vmul.f32 %v1371, 0.0051020407
        %v1392 = vmul.f32 %v1375, 0.0051020407
        %v1393 = vld [vmem:[%s2] sm:$0xff]
        %v1394 = vld [vmem:[%s2 + $0x8] sm:$0xff]
        %v1395 = vld [vmem:[%s2 + $0x10] sm:$0xff]
        %v1396 = vld [vmem:[%s2 + $0x18] sm:$0xff]
        %v1397 = vld [vmem:[%s2 + $0x20] sm:$0xff]
        %v1398 = vld [vmem:[%s2 + $0x28] sm:$0xff]
        %v1399 = vld [vmem:[%s2 + $0x30] sm:$0xff]
        %v1400 = vld [vmem:[%s2 + $0x38] sm:$0xff]
        %v1401 = vld [vmem:[%s2 + $0x40] sm:$0xff]
        %v1402 = vld [vmem:[%s2 + $0x48] sm:$0xff]
        %v1403 = vld [vmem:[%s2 + $0x50] sm:$0xff]
        %v1404 = vld [vmem:[%s2 + $0x58] sm:$0xff]
        %v1405 = vld [vmem:[%s2 + $0x60] sm:$0xff]
        %v1406 = vld [vmem:[%s2 + $0x68] sm:$0xff]
        %v1407 = vld [vmem:[%s2 + $0x70] sm:$0xff]
        %v1408 = vld [vmem:[%s2 + $0x78] sm:$0xff]
        %v1409 = vld [vmem:[%s2 + $0x80] sm:$0xff]
        %v1410 = vadd.f32 %v1376, 1e-05
        %v1411 = vadd.f32 %v1377, 1e-05
        %v1412 = vadd.f32 %v1378, 1e-05
        %v1413 = vadd.f32 %v1379, 1e-05
        %v1414 = vadd.f32 %v1380, 1e-05
        %v1415 = vadd.f32 %v1381, 1e-05
        %v1416 = vadd.f32 %v1382, 1e-05
        %v1417 = vadd.f32 %v1383, 1e-05
        %v1418 = vadd.f32 %v1384, 1e-05
        %v1419 = vadd.f32 %v1385, 1e-05
        %v1420 = vadd.f32 %v1386, 1e-05
        %v1421 = vadd.f32 %v1387, 1e-05
        %v1422 = vadd.f32 %v1388, 1e-05
        %v1423 = vadd.f32 %v1389, 1e-05
        %v1424 = vadd.f32 %v1390, 1e-05
        %v1425 = vadd.f32 %v1391, 1e-05
        %v1426 = vadd.f32 %v1392, 1e-05
        %v1427 = vrsqrt.pop %v1410
        %v1428 = vrsqrt.pop %v1411
        %v1429 = vrsqrt.pop %v1412
        %v1430 = vrsqrt.pop %v1413
        %v1431 = vrsqrt.pop %v1414
        %v1432 = vrsqrt.pop %v1415
        %v1433 = vrsqrt.pop %v1416
        %v1434 = vrsqrt.pop %v1417
        %v1435 = vrsqrt.pop %v1418
        %v1436 = vrsqrt.pop %v1419
        %v1437 = vrsqrt.pop %v1420
        %v1438 = vrsqrt.pop %v1421
        %v1439 = vrsqrt.pop %v1422
        %v1440 = vrsqrt.pop %v1423
        %v1441 = vrsqrt.pop %v1424
        %v1442 = vrsqrt.pop %v1425
        %v1443 = vrsqrt.pop %v1426
        %v1444 = vmul.f32 %v1393, %v1427
        %v1445 = vmul.f32 %v1394, %v1428
        %v1446 = vmul.f32 %v1395, %v1429
        %v1447 = vmul.f32 %v1396, %v1430
        %v1448 = vmul.f32 %v1397, %v1431
        %v1449 = vmul.f32 %v1398, %v1432
        %v1450 = vmul.f32 %v1399, %v1433
        %v1451 = vmul.f32 %v1400, %v1434
        %v1452 = vmul.f32 %v1401, %v1435
        %v1453 = vmul.f32 %v1402, %v1436
        %v1454 = vmul.f32 %v1403, %v1437
        %v1455 = vmul.f32 %v1404, %v1438
        %v1456 = vmul.f32 %v1405, %v1439
        %v1457 = vmul.f32 %v1406, %v1440
        %v1458 = vmul.f32 %v1407, %v1441
        %v1459 = vmul.f32 %v1408, %v1442
        %v1460 = vmul.f32 %v1409, %v1443
        %1462 = vset.pattern.permute.xlu0 0
        %1463 = vperm.xlu0 %1462, %v1444
        %v1464 = vpop.permute.xlu0 %1463
        %1467 = vset.pattern.permute.xlu0 0
        %1468 = vperm.xlu0 %1467, %v1445
        %v1469 = vpop.permute.xlu0 %1468
        %1472 = vset.pattern.permute.xlu0 0
        %1473 = vperm.xlu0 %1472, %v1446
        %v1474 = vpop.permute.xlu0 %1473
        %1477 = vset.pattern.permute.xlu0 0
        %1478 = vperm.xlu0 %1477, %v1447
        %v1479 = vpop.permute.xlu0 %1478
        %1482 = vset.pattern.permute.xlu0 0
        %1483 = vperm.xlu0 %1482, %v1448
        %v1484 = vpop.permute.xlu0 %1483
        %1487 = vset.pattern.permute.xlu0 0
        %1488 = vperm.xlu0 %1487, %v1449
        %v1489 = vpop.permute.xlu0 %1488
        %1492 = vset.pattern.permute.xlu0 0
        %1493 = vperm.xlu0 %1492, %v1450
        %v1494 = vpop.permute.xlu0 %1493
        %1497 = vset.pattern.permute.xlu0 0
        %1498 = vperm.xlu0 %1497, %v1451
        %v1499 = vpop.permute.xlu0 %1498
        %1502 = vset.pattern.permute.xlu0 0
        %1503 = vperm.xlu0 %1502, %v1452
        %v1504 = vpop.permute.xlu0 %1503
        %1507 = vset.pattern.permute.xlu0 0
        %1508 = vperm.xlu0 %1507, %v1453
        %v1509 = vpop.permute.xlu0 %1508
        %1512 = vset.pattern.permute.xlu0 0
        %1513 = vperm.xlu0 %1512, %v1454
        %v1514 = vpop.permute.xlu0 %1513
        %1517 = vset.pattern.permute.xlu0 0
        %1518 = vperm.xlu0 %1517, %v1455
        %v1519 = vpop.permute.xlu0 %1518
        %1522 = vset.pattern.permute.xlu0 0
        %1523 = vperm.xlu0 %1522, %v1456
        %v1524 = vpop.permute.xlu0 %1523
        %1527 = vset.pattern.permute.xlu0 0
        %1528 = vperm.xlu0 %1527, %v1457
        %v1529 = vpop.permute.xlu0 %1528
        %1532 = vset.pattern.permute.xlu0 0
        %1533 = vperm.xlu0 %1532, %v1458
        %v1534 = vpop.permute.xlu0 %1533
        %1537 = vset.pattern.permute.xlu0 0
        %1538 = vperm.xlu0 %1537, %v1459
        %v1539 = vpop.permute.xlu0 %1538
        %1542 = vset.pattern.permute.xlu0 0
        %1543 = vperm.xlu0 %1542, %v1460
        %v1544 = vpop.permute.xlu0 %1543
        %v1546 = vmul.f32 %v1240, %v1464
        %v1547 = vmul.f32 %v1241, %v1464
        %v1548 = vmul.f32 %v1242, %v1469
        %v1549 = vmul.f32 %v1243, %v1469
        %v1550 = vmul.f32 %v1244, %v1474
        %v1551 = vmul.f32 %v1245, %v1474
        %v1552 = vmul.f32 %v1246, %v1479
        %v1553 = vmul.f32 %v1247, %v1479
        %v1554 = vmul.f32 %v1248, %v1484
        %v1555 = vmul.f32 %v1249, %v1484
        %v1556 = vmul.f32 %v1250, %v1489
        %v1557 = vmul.f32 %v1251, %v1489
        %v1558 = vmul.f32 %v1252, %v1494
        %v1559 = vmul.f32 %v1253, %v1494
        %v1560 = vmul.f32 %v1254, %v1499
        %v1561 = vmul.f32 %v1255, %v1499
        %v1562 = vmul.f32 %v1256, %v1504
        %v1563 = vmul.f32 %v1257, %v1504
        %v1564 = vmul.f32 %v1258, %v1509
        %v1565 = vmul.f32 %v1259, %v1509
        %v1566 = vmul.f32 %v1260, %v1514
        %v1567 = vmul.f32 %v1261, %v1514
        %v1568 = vmul.f32 %v1262, %v1519
        %v1569 = vmul.f32 %v1263, %v1519
        %v1570 = vmul.f32 %v1264, %v1524
        %v1571 = vmul.f32 %v1265, %v1524
        %v1572 = vmul.f32 %v1266, %v1529
        %v1573 = vmul.f32 %v1267, %v1529
        %v1574 = vmul.f32 %v1268, %v1534
        %v1575 = vmul.f32 %v1269, %v1534
        %v1576 = vmul.f32 %v1270, %v1539
        %v1577 = vmul.f32 %v1271, %v1539
        %v1578 = vmul.f32 %v1272, %v1544
        %v1579 = vmul.f32 %v1273, %v1544
        %1580 = vst [vmem:[#allocation2] sm:$0xff] %v1546
        %1581 = vst.msk [vmem:[#allocation2 + $0x8] sm:$0xff] %vm1154, %v1547
        %1582 = vst [vmem:[#allocation2 + $0x10] sm:$0xff] %v1548
        %1583 = vst.msk [vmem:[#allocation2 + $0x18] sm:$0xff] %vm1154, %v1549
        %1584 = vst [vmem:[#allocation2 + $0x20] sm:$0xff] %v1550
        %1585 = vst.msk [vmem:[#allocation2 + $0x28] sm:$0xff] %vm1154, %v1551
        %1586 = vst [vmem:[#allocation2 + $0x30] sm:$0xff] %v1552
        %1587 = vst.msk [vmem:[#allocation2 + $0x38] sm:$0xff] %vm1154, %v1553
        %1588 = vst [vmem:[#allocation2 + $0x40] sm:$0xff] %v1554
        %1589 = vst.msk [vmem:[#allocation2 + $0x48] sm:$0xff] %vm1154, %v1555
        %1590 = vst [vmem:[#allocation2 + $0x50] sm:$0xff] %v1556
        %1591 = vst.msk [vmem:[#allocation2 + $0x58] sm:$0xff] %vm1154, %v1557
        %1592 = vst [vmem:[#allocation2 + $0x60] sm:$0xff] %v1558
        %1593 = vst.msk [vmem:[#allocation2 + $0x68] sm:$0xff] %vm1154, %v1559
        %1594 = vst [vmem:[#allocation2 + $0x70] sm:$0xff] %v1560
        %1595 = vst.msk [vmem:[#allocation2 + $0x78] sm:$0xff] %vm1154, %v1561
        %1596 = vst [vmem:[#allocation2 + $0x80] sm:$0xff] %v1562
        %1597 = vst.msk [vmem:[#allocation2 + $0x88] sm:$0xff] %vm1154, %v1563
        %1598 = vst [vmem:[#allocation2 + $0x90] sm:$0xff] %v1564
        %1599 = vst.msk [vmem:[#allocation2 + $0x98] sm:$0xff] %vm1154, %v1565
        %1600 = vst [vmem:[#allocation2 + $0xa0] sm:$0xff] %v1566
        %1601 = vst.msk [vmem:[#allocation2 + $0xa8] sm:$0xff] %vm1154, %v1567
        %1602 = vst [vmem:[#allocation2 + $0xb0] sm:$0xff] %v1568
        %1603 = vst.msk [vmem:[#allocation2 + $0xb8] sm:$0xff] %vm1154, %v1569
        %1604 = vst [vmem:[#allocation2 + $0xc0] sm:$0xff] %v1570
        %1605 = vst.msk [vmem:[#allocation2 + $0xc8] sm:$0xff] %vm1154, %v1571
        %1606 = vst [vmem:[#allocation2 + $0xd0] sm:$0xff] %v1572
        %1607 = vst.msk [vmem:[#allocation2 + $0xd8] sm:$0xff] %vm1154, %v1573
        %1608 = vst [vmem:[#allocation2 + $0xe0] sm:$0xff] %v1574
        %1609 = vst.msk [vmem:[#allocation2 + $0xe8] sm:$0xff] %vm1154, %v1575
        %1610 = vst [vmem:[#allocation2 + $0xf0] sm:$0xff] %v1576
        %1611 = vst.msk [vmem:[#allocation2 + $0xf8] sm:$0xff] %vm1154, %v1577
        %1612 = vst [vmem:[#allocation2 + $0x100] sm:$0xff] %v1578
        %1613 = vst.msk [vmem:[#allocation2 + $0x108] sm:$0xff] %vm1154, %v1579
      $region48: #{mul_conv_bn_conv_bn.1} parent=43 // pred_fallthru
        _
      %v1614 = vld [vmem:[%s333] sm:$0xff]
      %v1615 = vld [vmem:[%s333 + $0x8] sm:$0xff]
      %v1616 = vld [vmem:[%s333 + $0x10] sm:$0xff]
      %v1617 = vld [vmem:[%s333 + $0x18] sm:$0xff]
      %v1618 = vld [vmem:[%s333 + $0x20] sm:$0xff]
      %v1619 = vld [vmem:[%s333 + $0x28] sm:$0xff]
      %v1620 = vld [vmem:[%s333 + $0x30] sm:$0xff]
      %v1621 = vld [vmem:[%s333 + $0x38] sm:$0xff]
      %v1622 = vld [vmem:[%s333 + $0x40] sm:$0xff]
      %v1623 = vld [vmem:[%s333 + $0x48] sm:$0xff]
      %v1624 = vld [vmem:[%s333 + $0x50] sm:$0xff]
      %v1625 = vld [vmem:[%s333 + $0x58] sm:$0xff]
      %v1626 = vld [vmem:[%s333 + $0x60] sm:$0xff]
      %v1627 = vld [vmem:[%s333 + $0x68] sm:$0xff]
      %v1628 = vld [vmem:[%s333 + $0x70] sm:$0xff]
      %v1629 = vld [vmem:[%s333 + $0x78] sm:$0xff]
      %v1630 = vld [vmem:[%s333 + $0x80] sm:$0xff]
      %v1631 = vld [vmem:[%s333 + $0x88] sm:$0xff]
      %v1632 = vld [vmem:[%s333 + $0x90] sm:$0xff]
      %v1633 = vld [vmem:[%s333 + $0x98] sm:$0xff]
      %v1634 = vld [vmem:[%s333 + $0xa0] sm:$0xff]
      %v1635 = vld [vmem:[%s333 + $0xa8] sm:$0xff]
      %v1636 = vld [vmem:[%s333 + $0xb0] sm:$0xff]
      %v1637 = vld [vmem:[%s333 + $0xb8] sm:$0xff]
      %v1638 = vld [vmem:[%s333 + $0xc0] sm:$0xff]
      %v1639 = vld [vmem:[%s333 + $0xc8] sm:$0xff]
      %v1640 = vld [vmem:[%s333 + $0xd0] sm:$0xff]
      %v1641 = vld [vmem:[%s333 + $0xd8] sm:$0xff]
      %v1642 = vld [vmem:[%s333 + $0xe0] sm:$0xff]
      %v1643 = vld [vmem:[%s333 + $0xe8] sm:$0xff]
      %v1644 = vld [vmem:[%s333 + $0xf0] sm:$0xff]
      %v1645 = vld [vmem:[%s333 + $0xf8] sm:$0xff]
      %v1646 = vld [vmem:[%s333 + $0x100] sm:$0xff]
      %v1647 = vld [vmem:[%s333 + $0x108] sm:$0xff]
      %v1648 = vld [vmem:[#allocation2] sm:$0xff]
      %v1649 = vld [vmem:[#allocation2 + $0x8] sm:$0xff]
      %v1650 = vld [vmem:[#allocation2 + $0x10] sm:$0xff]
      %v1651 = vld [vmem:[#allocation2 + $0x18] sm:$0xff]
      %v1652 = vld [vmem:[#allocation2 + $0x20] sm:$0xff]
      %v1653 = vld [vmem:[#allocation2 + $0x28] sm:$0xff]
      %v1654 = vld [vmem:[#allocation2 + $0x30] sm:$0xff]
      %v1655 = vld [vmem:[#allocation2 + $0x38] sm:$0xff]
      %v1656 = vld [vmem:[#allocation2 + $0x40] sm:$0xff]
      %v1657 = vld [vmem:[#allocation2 + $0x48] sm:$0xff]
      %v1658 = vld [vmem:[#allocation2 + $0x50] sm:$0xff]
      %v1659 = vld [vmem:[#allocation2 + $0x58] sm:$0xff]
      %v1660 = vld [vmem:[#allocation2 + $0x60] sm:$0xff]
      %v1661 = vld [vmem:[#allocation2 + $0x68] sm:$0xff]
      %v1662 = vld [vmem:[#allocation2 + $0x70] sm:$0xff]
      %v1663 = vld [vmem:[#allocation2 + $0x78] sm:$0xff]
      %v1664 = vld [vmem:[#allocation2 + $0x80] sm:$0xff]
      %v1665 = vld [vmem:[#allocation2 + $0x88] sm:$0xff]
      %v1666 = vld [vmem:[#allocation2 + $0x90] sm:$0xff]
      %v1667 = vld [vmem:[#allocation2 + $0x98] sm:$0xff]
      %v1668 = vld [vmem:[#allocation2 + $0xa0] sm:$0xff]
      %v1669 = vld [vmem:[#allocation2 + $0xa8] sm:$0xff]
      %v1670 = vld [vmem:[#allocation2 + $0xb0] sm:$0xff]
      %v1671 = vld [vmem:[#allocation2 + $0xb8] sm:$0xff]
      %v1672 = vld [vmem:[#allocation2 + $0xc0] sm:$0xff]
      %v1673 = vld [vmem:[#allocation2 + $0xc8] sm:$0xff]
      %v1674 = vld [vmem:[#allocation2 + $0xd0] sm:$0xff]
      %v1675 = vld [vmem:[#allocation2 + $0xd8] sm:$0xff]
      %v1676 = vld [vmem:[#allocation2 + $0xe0] sm:$0xff]
      %v1677 = vld [vmem:[#allocation2 + $0xe8] sm:$0xff]
      %v1678 = vld [vmem:[#allocation2 + $0xf0] sm:$0xff]
      %v1679 = vld [vmem:[#allocation2 + $0xf8] sm:$0xff]
      %v1680 = vld [vmem:[#allocation2 + $0x100] sm:$0xff]
      %v1681 = vld [vmem:[#allocation2 + $0x108] sm:$0xff]
      %vm1682 = vcmask 64512
      %v1684 = vsel %vm1682, %v1615, 0
      %v1687 = vsel %vm1682, %v1617, 0
      %v1690 = vsel %vm1682, %v1619, 0
      %v1693 = vsel %vm1682, %v1621, 0
      %v1696 = vsel %vm1682, %v1623, 0
      %v1699 = vsel %vm1682, %v1625, 0
      %v1702 = vsel %vm1682, %v1627, 0
      %v1705 = vsel %vm1682, %v1629, 0
      %v1708 = vsel %vm1682, %v1631, 0
      %v1711 = vsel %vm1682, %v1633, 0
      %v1714 = vsel %vm1682, %v1635, 0
      %v1717 = vsel %vm1682, %v1637, 0
      %v1720 = vsel %vm1682, %v1639, 0
      %v1723 = vsel %vm1682, %v1641, 0
      %v1726 = vsel %vm1682, %v1643, 0
      %v1729 = vsel %vm1682, %v1645, 0
      %v1732 = vsel %vm1682, %v1647, 0
      %1734 = vmatprep.subr.mxu0 %v1649
      %1735 = vmatpush1.msra.mxu0 %v1648
      %1736 = vmatprep.subr.mxu0 %v1651
      %1737 = vmatpush1.msra.mxu0 %v1650
      %1738 = vmatprep.subr.mxu0 %v1653
      %1739 = vmatpush1.msra.mxu0 %v1652
      %1740 = vmatprep.subr.mxu0 %v1655
      %1741 = vmatpush1.msra.mxu0 %v1654
      %1742 = vmatprep.subr.mxu0 %v1657
      %1743 = vmatpush1.msra.mxu0 %v1656
      %1744 = vmatprep.subr.mxu0 %v1659
      %1745 = vmatpush1.msra.mxu0 %v1658
      %1746 = vmatprep.subr.mxu0 %v1661
      %1747 = vmatpush1.msra.mxu0 %v1660
      %1748 = vmatprep.subr.mxu0 %v1663
      %1749 = vmatpush1.msra.mxu0 %v1662
      %1750 = vmatprep.subr.mxu0 %v1665
      %1751 = vmatpush1.msra.mxu0 %v1664
      %1752 = vmatprep.subr.mxu0 %v1667
      %1753 = vmatpush1.msra.mxu0 %v1666
      %1754 = vmatprep.subr.mxu0 %v1669
      %1755 = vmatpush1.msra.mxu0 %v1668
      %1756 = vmatprep.subr.mxu0 %v1671
      %1757 = vmatpush1.msra.mxu0 %v1670
      %1758 = vmatprep.subr.mxu0 %v1673
      %1759 = vmatpush1.msra.mxu0 %v1672
      %1760 = vmatprep.subr.mxu0 %v1675
      %1761 = vmatpush1.msra.mxu0 %v1674
      %1762 = vmatprep.subr.mxu0 %v1677
      %1763 = vmatpush1.msra.mxu0 %v1676
      %1764 = vmatprep.subr.mxu0 %v1679
      %1765 = vmatpush1.msra.mxu0 %v1678
      %1766 = vmatprep.subr.mxu0 %v1681
      %1767 = vmatpush1.msra.mxu0 %v1680
      %1768 = vmatprep.subr.mxu0 0.0
      %1769 = vmatpush1.msra.mxu0 0.0
      %1770 = vmatprep.subr.mxu0 0.0
      %1771 = vmatpush1.msra.mxu0 0.0
      %1772 = vmatprep.subr.mxu0 0.0
      %1773 = vmatpush1.msra.mxu0 0.0
      %1774 = vmatprep.subr.mxu0 0.0
      %1775 = vmatpush1.msra.mxu0 0.0
      %1776 = vmatprep.subr.mxu0 0.0
      %1777 = vmatpush1.msra.mxu0 0.0
      %1778 = vmatprep.subr.mxu0 0.0
      %1779 = vmatpush1.msra.mxu0 0.0
      %1780 = vmatprep.subr.mxu0 0.0
      %1781 = vmatpush1.msra.mxu0 0.0
      %1782 = vmatprep.subr.mxu0 0.0
      %1783 = vmatpush1.msra.mxu0 0.0
      %1784 = vmatprep.subr.mxu0 0.0
      %1785 = vmatpush1.msra.mxu0 0.0
      %1786 = vmatprep.subr.mxu0 0.0
      %1787 = vmatpush1.msra.mxu0 0.0
      %1788 = vmatprep.subr.mxu0 0.0
      %1789 = vmatpush1.msra.mxu0 0.0
      %1790 = vmatprep.subr.mxu0 0.0
      %1791 = vmatpush1.msra.mxu0 0.0
      %1792 = vmatprep.subr.mxu0 0.0
      %1793 = vmatpush1.msra.mxu0 0.0
      %1794 = vmatprep.subr.mxu0 0.0
      %1795 = vmatpush1.msra.mxu0 0.0
      %1796 = vmatprep.subr.mxu0 0.0
      %1797 = vmatpush1.msra.mxu0 0.0
      %1798 = vmatprep.mubr.f32.mxu0 %v1684
      %1799 = vmatmul.mubr.f32.gmra.mrb[0].mxu0 %v1614
      %v1800 = vpop.f32.mrb[0].mxu0
      %v1801 = vadd.f32 0.0, %v1800
      %v1802 = vpop.f32.mrb[0].mxu0
      %v1803 = vadd.f32 0.0, %v1802
      %1804 = vmatprep.mubr.f32.mxu0 %v1687
      %1805 = vmatmul.mubr.f32.gmra.mrb[0].mxu0 %v1616
      %v1806 = vpop.f32.mrb[0].mxu0
      %v1807 = vadd.f32 0.0, %v1806
      %v1808 = vpop.f32.mrb[0].mxu0
      %v1809 = vadd.f32 0.0, %v1808
      %1810 = vmatprep.mubr.f32.mxu0 %v1690
      %1811 = vmatmul.mubr.f32.gmra.mrb[0].mxu0 %v1618
      %v1812 = vpop.f32.mrb[0].mxu0
      %v1813 = vadd.f32 0.0, %v1812
      %v1814 = vpop.f32.mrb[0].mxu0
      %v1815 = vadd.f32 0.0, %v1814
      %1816 = vmatprep.mubr.f32.mxu0 %v1693
      %1817 = vmatmul.mubr.f32.gmra.mrb[0].mxu0 %v1620
      %v1818 = vpop.f32.mrb[0].mxu0
      %v1819 = vadd.f32 0.0, %v1818
      %v1820 = vpop.f32.mrb[0].mxu0
      %v1821 = vadd.f32 0.0, %v1820
      %1822 = vmatprep.mubr.f32.mxu0 %v1696
      %1823 = vmatmul.mubr.f32.gmra.mrb[0].mxu0 %v1622
      %v1824 = vpop.f32.mrb[0].mxu0
      %v1825 = vadd.f32 0.0, %v1824
      %v1826 = vpop.f32.mrb[0].mxu0
      %v1827 = vadd.f32 0.0, %v1826
      %1828 = vmatprep.mubr.f32.mxu0 %v1699
      %1829 = vmatmul.mubr.f32.gmra.mrb[0].mxu0 %v1624
      %v1830 = vpop.f32.mrb[0].mxu0
      %v1831 = vadd.f32 0.0, %v1830
      %v1832 = vpop.f32.mrb[0].mxu0
      %v1833 = vadd.f32 0.0, %v1832
      %1834 = vmatprep.mubr.f32.mxu0 %v1702
      %1835 = vmatmul.mubr.f32.gmra.mrb[0].mxu0 %v1626
      %v1836 = vpop.f32.mrb[0].mxu0
      %v1837 = vadd.f32 0.0, %v1836
      %v1838 = vpop.f32.mrb[0].mxu0
      %v1839 = vadd.f32 0.0, %v1838
      %1840 = vmatprep.mubr.f32.mxu0 %v1705
      %1841 = vmatmul.mubr.f32.gmra.mrb[0].mxu0 %v1628
      %v1842 = vpop.f32.mrb[0].mxu0
      %v1843 = vadd.f32 0.0, %v1842
      %v1844 = vpop.f32.mrb[0].mxu0
      %v1845 = vadd.f32 0.0, %v1844
      %1846 = vmatprep.mubr.f32.mxu0 %v1708
      %1847 = vmatmul.mubr.f32.gmra.mrb[0].mxu0 %v1630
      %v1848 = vpop.f32.mrb[0].mxu0
      %v1849 = vadd.f32 0.0, %v1848
      %v1850 = vpop.f32.mrb[0].mxu0
      %v1851 = vadd.f32 0.0, %v1850
      %1852 = vmatprep.mubr.f32.mxu0 %v1711
      %1853 = vmatmul.mubr.f32.gmra.mrb[0].mxu0 %v1632
      %v1854 = vpop.f32.mrb[0].mxu0
      %v1855 = vadd.f32 0.0, %v1854
      %v1856 = vpop.f32.mrb[0].mxu0
      %v1857 = vadd.f32 0.0, %v1856
      %1858 = vmatprep.mubr.f32.mxu0 %v1714
      %1859 = vmatmul.mubr.f32.gmra.mrb[0].mxu0 %v1634
      %v1860 = vpop.f32.mrb[0].mxu0
      %v1861 = vadd.f32 0.0, %v1860
      %v1862 = vpop.f32.mrb[0].mxu0
      %v1863 = vadd.f32 0.0, %v1862
      %1864 = vmatprep.mubr.f32.mxu0 %v1717
      %1865 = vmatmul.mubr.f32.gmra.mrb[0].mxu0 %v1636
      %v1866 = vpop.f32.mrb[0].mxu0
      %v1867 = vadd.f32 0.0, %v1866
      %v1868 = vpop.f32.mrb[0].mxu0
      %v1869 = vadd.f32 0.0, %v1868
      %1870 = vmatprep.mubr.f32.mxu0 %v1720
      %1871 = vmatmul.mubr.f32.gmra.mrb[0].mxu0 %v1638
      %v1872 = vpop.f32.mrb[0].mxu0
      %v1873 = vadd.f32 0.0, %v1872
      %v1874 = vpop.f32.mrb[0].mxu0
      %v1875 = vadd.f32 0.0, %v1874
      %1876 = vmatprep.mubr.f32.mxu0 %v1723
      %1877 = vmatmul.mubr.f32.gmra.mrb[0].mxu0 %v1640
      %v1878 = vpop.f32.mrb[0].mxu0
      %v1879 = vadd.f32 0.0, %v1878
      %v1880 = vpop.f32.mrb[0].mxu0
      %v1881 = vadd.f32 0.0, %v1880
      %1882 = vmatprep.mubr.f32.mxu0 %v1726
      %1883 = vmatmul.mubr.f32.gmra.mrb[0].mxu0 %v1642
      %v1884 = vpop.f32.mrb[0].mxu0
      %v1885 = vadd.f32 0.0, %v1884
      %v1886 = vpop.f32.mrb[0].mxu0
      %v1887 = vadd.f32 0.0, %v1886
      %1888 = vmatprep.mubr.f32.mxu0 %v1729
      %1889 = vmatmul.mubr.f32.gmra.mrb[0].mxu0 %v1644
      %v1890 = vpop.f32.mrb[0].mxu0
      %v1891 = vadd.f32 0.0, %v1890
      %v1892 = vpop.f32.mrb[0].mxu0
      %v1893 = vadd.f32 0.0, %v1892
      %1894 = vmatprep.mubr.f32.mxu0 %v1732
      %1895 = vmatmul.mubr.f32.gmra.mrb[0].mxu0 %v1646
      %v1896 = vpop.f32.mrb[0].mxu0
      %v1897 = vadd.f32 0.0, %v1896
      %v1898 = vpop.f32.mrb[0].mxu0
      %v1899 = vadd.f32 0.0, %v1898
      %1900 = vdwg.mxu0
      %v1901 = vmul.f32 %v1801, %v1801
      %v1902 = vmul.f32 %v1803, %v1803
      %v1903 = vmul.f32 %v1807, %v1807
      %v1904 = vmul.f32 %v1809, %v1809
      %v1905 = vmul.f32 %v1813, %v1813
      %v1906 = vmul.f32 %v1815, %v1815
      %v1907 = vmul.f32 %v1819, %v1819
      %v1908 = vmul.f32 %v1821, %v1821
      %v1909 = vmul.f32 %v1825, %v1825
      %v1910 = vmul.f32 %v1827, %v1827
      %v1911 = vmul.f32 %v1831, %v1831
      %v1912 = vmul.f32 %v1833, %v1833
      %v1913 = vmul.f32 %v1837, %v1837
      %v1914 = vmul.f32 %v1839, %v1839
      %v1915 = vmul.f32 %v1843, %v1843
      %v1916 = vmul.f32 %v1845, %v1845
      %v1917 = vmul.f32 %v1849, %v1849
      %v1918 = vmul.f32 %v1851, %v1851
      %v1919 = vmul.f32 %v1855, %v1855
      %v1920 = vmul.f32 %v1857, %v1857
      %v1921 = vmul.f32 %v1861, %v1861
      %v1922 = vmul.f32 %v1863, %v1863
      %v1923 = vmul.f32 %v1867, %v1867
      %v1924 = vmul.f32 %v1869, %v1869
      %v1925 = vmul.f32 %v1873, %v1873
      %v1926 = vmul.f32 %v1875, %v1875
      %v1927 = vmul.f32 %v1879, %v1879
      %v1928 = vmul.f32 %v1881, %v1881
      %v1929 = vmul.f32 %v1885, %v1885
      %v1930 = vmul.f32 %v1887, %v1887
      %v1931 = vmul.f32 %v1891, %v1891
      %v1932 = vmul.f32 %v1893, %v1893
      %v1933 = vmul.f32 %v1897, %v1897
      %v1934 = vmul.f32 %v1899, %v1899
      %vm1935 = vcmask 556032
      %v1936 = vsel %vm1935, %v1902, 0.0
      %v1937 = vadd.f32 %v1901, %v1936
      %1938 = vadd.xlane.f32.xlu0 %v1937
      %v1939 = vpop.xlane.xlu0 %1938
      %v1940 = vsel %vm1935, %v1904, 0.0
      %v1941 = vadd.f32 %v1903, %v1940
      %1942 = vadd.xlane.f32.xlu0 %v1941
      %v1943 = vpop.xlane.xlu0 %1942
      %v1944 = vsel %vm1935, %v1906, 0.0
      %v1945 = vadd.f32 %v1905, %v1944
      %1946 = vadd.xlane.f32.xlu0 %v1945
      %v1947 = vpop.xlane.xlu0 %1946
      %v1948 = vsel %vm1935, %v1908, 0.0
      %v1949 = vadd.f32 %v1907, %v1948
      %1950 = vadd.xlane.f32.xlu0 %v1949
      %v1951 = vpop.xlane.xlu0 %1950
      %v1952 = vsel %vm1935, %v1910, 0.0
      %v1953 = vadd.f32 %v1909, %v1952
      %1954 = vadd.xlane.f32.xlu0 %v1953
      %v1955 = vpop.xlane.xlu0 %1954
      %v1956 = vsel %vm1935, %v1912, 0.0
      %v1957 = vadd.f32 %v1911, %v1956
      %1958 = vadd.xlane.f32.xlu0 %v1957
      %v1959 = vpop.xlane.xlu0 %1958
      %v1960 = vsel %vm1935, %v1914, 0.0
      %v1961 = vadd.f32 %v1913, %v1960
      %1962 = vadd.xlane.f32.xlu0 %v1961
      %v1963 = vpop.xlane.xlu0 %1962
      %v1964 = vsel %vm1935, %v1916, 0.0
      %v1965 = vadd.f32 %v1915, %v1964
      %1966 = vadd.xlane.f32.xlu0 %v1965
      %v1967 = vpop.xlane.xlu0 %1966
      %v1968 = vsel %vm1935, %v1918, 0.0
      %v1969 = vadd.f32 %v1917, %v1968
      %1970 = vadd.xlane.f32.xlu0 %v1969
      %v1971 = vpop.xlane.xlu0 %1970
      %v1972 = vsel %vm1935, %v1920, 0.0
      %v1973 = vadd.f32 %v1919, %v1972
      %1974 = vadd.xlane.f32.xlu0 %v1973
      %v1975 = vpop.xlane.xlu0 %1974
      %v1976 = vsel %vm1935, %v1922, 0.0
      %v1977 = vadd.f32 %v1921, %v1976
      %1978 = vadd.xlane.f32.xlu0 %v1977
      %v1979 = vpop.xlane.xlu0 %1978
      %v1980 = vsel %vm1935, %v1924, 0.0
      %v1981 = vadd.f32 %v1923, %v1980
      %1982 = vadd.xlane.f32.xlu0 %v1981
      %v1983 = vpop.xlane.xlu0 %1982
      %v1984 = vsel %vm1935, %v1926, 0.0
      %v1985 = vadd.f32 %v1925, %v1984
      %1986 = vadd.xlane.f32.xlu0 %v1985
      %v1987 = vpop.xlane.xlu0 %1986
      %v1988 = vsel %vm1935, %v1928, 0.0
      %v1989 = vadd.f32 %v1927, %v1988
      %1990 = vadd.xlane.f32.xlu0 %v1989
      %v1991 = vpop.xlane.xlu0 %1990
      %v1992 = vsel %vm1935, %v1930, 0.0
      %v1993 = vadd.f32 %v1929, %v1992
      %1994 = vadd.xlane.f32.xlu0 %v1993
      %v1995 = vpop.xlane.xlu0 %1994
      %v1996 = vsel %vm1935, %v1932, 0.0
      %v1997 = vadd.f32 %v1931, %v1996
      %1998 = vadd.xlane.f32.xlu0 %v1997
      %v1999 = vpop.xlane.xlu0 %1998
      %v2000 = vsel %vm1935, %v1934, 0.0
      %v2001 = vadd.f32 %v1933, %v2000
      %2002 = vadd.xlane.f32.xlu0 %v2001
      %v2003 = vpop.xlane.xlu0 %2002
      %v2004 = vmul.f32 %v1939, 0.0051020407
      %v2005 = vmul.f32 %v1943, 0.0051020407
      %v2006 = vmul.f32 %v1947, 0.0051020407
      %v2007 = vmul.f32 %v1951, 0.0051020407
      %v2008 = vmul.f32 %v1955, 0.0051020407
      %v2009 = vmul.f32 %v1959, 0.0051020407
      %v2010 = vmul.f32 %v1963, 0.0051020407
      %v2011 = vmul.f32 %v1967, 0.0051020407
      %v2012 = vmul.f32 %v1971, 0.0051020407
      %v2013 = vmul.f32 %v1975, 0.0051020407
      %v2014 = vmul.f32 %v1979, 0.0051020407
      %v2015 = vmul.f32 %v1983, 0.0051020407
      %v2016 = vmul.f32 %v1987, 0.0051020407
      %v2017 = vmul.f32 %v1991, 0.0051020407
      %v2018 = vmul.f32 %v1995, 0.0051020407
      %v2019 = vmul.f32 %v1999, 0.0051020407
      %v2020 = vmul.f32 %v2003, 0.0051020407
      %v2021 = vld [vmem:[%s343] sm:$0xff]
      %v2022 = vld [vmem:[%s343 + $0x8] sm:$0xff]
      %v2023 = vld [vmem:[%s343 + $0x10] sm:$0xff]
      %v2024 = vld [vmem:[%s343 + $0x18] sm:$0xff]
      %v2025 = vld [vmem:[%s343 + $0x20] sm:$0xff]
      %v2026 = vld [vmem:[%s343 + $0x28] sm:$0xff]
      %v2027 = vld [vmem:[%s343 + $0x30] sm:$0xff]
      %v2028 = vld [vmem:[%s343 + $0x38] sm:$0xff]
      %v2029 = vld [vmem:[%s343 + $0x40] sm:$0xff]
      %v2030 = vld [vmem:[%s343 + $0x48] sm:$0xff]
      %v2031 = vld [vmem:[%s343 + $0x50] sm:$0xff]
      %v2032 = vld [vmem:[%s343 + $0x58] sm:$0xff]
      %v2033 = vld [vmem:[%s343 + $0x60] sm:$0xff]
      %v2034 = vld [vmem:[%s343 + $0x68] sm:$0xff]
      %v2035 = vld [vmem:[%s343 + $0x70] sm:$0xff]
      %v2036 = vld [vmem:[%s343 + $0x78] sm:$0xff]
      %v2037 = vld [vmem:[%s343 + $0x80] sm:$0xff]
      %v2038 = vadd.f32 %v2004, 1e-05
      %v2039 = vadd.f32 %v2005, 1e-05
      %v2040 = vadd.f32 %v2006, 1e-05
      %v2041 = vadd.f32 %v2007, 1e-05
      %v2042 = vadd.f32 %v2008, 1e-05
      %v2043 = vadd.f32 %v2009, 1e-05
      %v2044 = vadd.f32 %v2010, 1e-05
      %v2045 = vadd.f32 %v2011, 1e-05
      %v2046 = vadd.f32 %v2012, 1e-05
      %v2047 = vadd.f32 %v2013, 1e-05
      %v2048 = vadd.f32 %v2014, 1e-05
      %v2049 = vadd.f32 %v2015, 1e-05
      %v2050 = vadd.f32 %v2016, 1e-05
      %v2051 = vadd.f32 %v2017, 1e-05
      %v2052 = vadd.f32 %v2018, 1e-05
      %v2053 = vadd.f32 %v2019, 1e-05
      %v2054 = vadd.f32 %v2020, 1e-05
      %v2055 = vrsqrt.pop %v2038
      %v2056 = vrsqrt.pop %v2039
      %v2057 = vrsqrt.pop %v2040
      %v2058 = vrsqrt.pop %v2041
      %v2059 = vrsqrt.pop %v2042
      %v2060 = vrsqrt.pop %v2043
      %v2061 = vrsqrt.pop %v2044
      %v2062 = vrsqrt.pop %v2045
      %v2063 = vrsqrt.pop %v2046
      %v2064 = vrsqrt.pop %v2047
      %v2065 = vrsqrt.pop %v2048
      %v2066 = vrsqrt.pop %v2049
      %v2067 = vrsqrt.pop %v2050
      %v2068 = vrsqrt.pop %v2051
      %v2069 = vrsqrt.pop %v2052
      %v2070 = vrsqrt.pop %v2053
      %v2071 = vrsqrt.pop %v2054
      %v2072 = vmul.f32 %v2021, %v2055
      %v2073 = vmul.f32 %v2022, %v2056
      %v2074 = vmul.f32 %v2023, %v2057
      %v2075 = vmul.f32 %v2024, %v2058
      %v2076 = vmul.f32 %v2025, %v2059
      %v2077 = vmul.f32 %v2026, %v2060
      %v2078 = vmul.f32 %v2027, %v2061
      %v2079 = vmul.f32 %v2028, %v2062
      %v2080 = vmul.f32 %v2029, %v2063
      %v2081 = vmul.f32 %v2030, %v2064
      %v2082 = vmul.f32 %v2031, %v2065
      %v2083 = vmul.f32 %v2032, %v2066
      %v2084 = vmul.f32 %v2033, %v2067
      %v2085 = vmul.f32 %v2034, %v2068
      %v2086 = vmul.f32 %v2035, %v2069
      %v2087 = vmul.f32 %v2036, %v2070
      %v2088 = vmul.f32 %v2037, %v2071
      %2090 = vset.pattern.permute.xlu0 0
      %2091 = vperm.xlu0 %2090, %v2072
      %v2092 = vpop.permute.xlu0 %2091
      %2095 = vset.pattern.permute.xlu0 0
      %2096 = vperm.xlu0 %2095, %v2073
      %v2097 = vpop.permute.xlu0 %2096
      %2100 = vset.pattern.permute.xlu0 0
      %2101 = vperm.xlu0 %2100, %v2074
      %v2102 = vpop.permute.xlu0 %2101
      %2105 = vset.pattern.permute.xlu0 0
      %2106 = vperm.xlu0 %2105, %v2075
      %v2107 = vpop.permute.xlu0 %2106
      %2110 = vset.pattern.permute.xlu0 0
      %2111 = vperm.xlu0 %2110, %v2076
      %v2112 = vpop.permute.xlu0 %2111
      %2115 = vset.pattern.permute.xlu0 0
      %2116 = vperm.xlu0 %2115, %v2077
      %v2117 = vpop.permute.xlu0 %2116
      %2120 = vset.pattern.permute.xlu0 0
      %2121 = vperm.xlu0 %2120, %v2078
      %v2122 = vpop.permute.xlu0 %2121
      %2125 = vset.pattern.permute.xlu0 0
      %2126 = vperm.xlu0 %2125, %v2079
      %v2127 = vpop.permute.xlu0 %2126
      %2130 = vset.pattern.permute.xlu0 0
      %2131 = vperm.xlu0 %2130, %v2080
      %v2132 = vpop.permute.xlu0 %2131
      %2135 = vset.pattern.permute.xlu0 0
      %2136 = vperm.xlu0 %2135, %v2081
      %v2137 = vpop.permute.xlu0 %2136
      %2140 = vset.pattern.permute.xlu0 0
      %2141 = vperm.xlu0 %2140, %v2082
      %v2142 = vpop.permute.xlu0 %2141
      %2145 = vset.pattern.permute.xlu0 0
      %2146 = vperm.xlu0 %2145, %v2083
      %v2147 = vpop.permute.xlu0 %2146
      %2150 = vset.pattern.permute.xlu0 0
      %2151 = vperm.xlu0 %2150, %v2084
      %v2152 = vpop.permute.xlu0 %2151
      %2155 = vset.pattern.permute.xlu0 0
      %2156 = vperm.xlu0 %2155, %v2085
      %v2157 = vpop.permute.xlu0 %2156
      %2160 = vset.pattern.permute.xlu0 0
      %2161 = vperm.xlu0 %2160, %v2086
      %v2162 = vpop.permute.xlu0 %2161
      %2165 = vset.pattern.permute.xlu0 0
      %2166 = vperm.xlu0 %2165, %v2087
      %v2167 = vpop.permute.xlu0 %2166
      %2170 = vset.pattern.permute.xlu0 0
      %2171 = vperm.xlu0 %2170, %v2088
      %v2172 = vpop.permute.xlu0 %2171
      %v2174 = vmul.f32 %v1801, %v2092
      %v2175 = vmul.f32 %v1803, %v2092
      %v2176 = vmul.f32 %v1807, %v2097
      %v2177 = vmul.f32 %v1809, %v2097
      %v2178 = vmul.f32 %v1813, %v2102
      %v2179 = vmul.f32 %v1815, %v2102
      %v2180 = vmul.f32 %v1819, %v2107
      %v2181 = vmul.f32 %v1821, %v2107
      %v2182 = vmul.f32 %v1825, %v2112
      %v2183 = vmul.f32 %v1827, %v2112
      %v2184 = vmul.f32 %v1831, %v2117
      %v2185 = vmul.f32 %v1833, %v2117
      %v2186 = vmul.f32 %v1837, %v2122
      %v2187 = vmul.f32 %v1839, %v2122
      %v2188 = vmul.f32 %v1843, %v2127
      %v2189 = vmul.f32 %v1845, %v2127
      %v2190 = vmul.f32 %v1849, %v2132
      %v2191 = vmul.f32 %v1851, %v2132
      %v2192 = vmul.f32 %v1855, %v2137
      %v2193 = vmul.f32 %v1857, %v2137
      %v2194 = vmul.f32 %v1861, %v2142
      %v2195 = vmul.f32 %v1863, %v2142
      %v2196 = vmul.f32 %v1867, %v2147
      %v2197 = vmul.f32 %v1869, %v2147
      %v2198 = vmul.f32 %v1873, %v2152
      %v2199 = vmul.f32 %v1875, %v2152
      %v2200 = vmul.f32 %v1879, %v2157
      %v2201 = vmul.f32 %v1881, %v2157
      %v2202 = vmul.f32 %v1885, %v2162
      %v2203 = vmul.f32 %v1887, %v2162
      %v2204 = vmul.f32 %v1891, %v2167
      %v2205 = vmul.f32 %v1893, %v2167
      %v2206 = vmul.f32 %v1897, %v2172
      %v2207 = vmul.f32 %v1899, %v2172
      %v2208 = vld [vmem:[%s353] sm:$0xff]
      %v2209 = vld [vmem:[%s353 + $0x8] sm:$0xff]
      %v2210 = vld [vmem:[%s353 + $0x10] sm:$0xff]
      %v2211 = vld [vmem:[%s353 + $0x18] sm:$0xff]
      %v2212 = vld [vmem:[%s353 + $0x20] sm:$0xff]
      %v2213 = vld [vmem:[%s353 + $0x28] sm:$0xff]
      %v2214 = vld [vmem:[%s353 + $0x30] sm:$0xff]
      %v2215 = vld [vmem:[%s353 + $0x38] sm:$0xff]
      %v2216 = vld [vmem:[%s353 + $0x40] sm:$0xff]
      %v2217 = vld [vmem:[%s353 + $0x48] sm:$0xff]
      %v2218 = vld [vmem:[%s353 + $0x50] sm:$0xff]
      %v2219 = vld [vmem:[%s353 + $0x58] sm:$0xff]
      %v2220 = vld [vmem:[%s353 + $0x60] sm:$0xff]
      %v2221 = vld [vmem:[%s353 + $0x68] sm:$0xff]
      %v2222 = vld [vmem:[%s353 + $0x70] sm:$0xff]
      %v2223 = vld [vmem:[%s353 + $0x78] sm:$0xff]
      %v2224 = vld [vmem:[%s353 + $0x80] sm:$0xff]
      %2226 = vset.pattern.permute.xlu0 0
      %2227 = vperm.xlu0 %2226, %v2208
      %v2228 = vpop.permute.xlu0 %2227
      %2231 = vset.pattern.permute.xlu0 0
      %2232 = vperm.xlu0 %2231, %v2209
      %v2233 = vpop.permute.xlu0 %2232
      %2236 = vset.pattern.permute.xlu0 0
      %2237 = vperm.xlu0 %2236, %v2210
      %v2238 = vpop.permute.xlu0 %2237
      %2241 = vset.pattern.permute.xlu0 0
      %2242 = vperm.xlu0 %2241, %v2211
      %v2243 = vpop.permute.xlu0 %2242
      %2246 = vset.pattern.permute.xlu0 0
      %2247 = vperm.xlu0 %2246, %v2212
      %v2248 = vpop.permute.xlu0 %2247
      %2251 = vset.pattern.permute.xlu0 0
      %2252 = vperm.xlu0 %2251, %v2213
      %v2253 = vpop.permute.xlu0 %2252
      %2256 = vset.pattern.permute.xlu0 0
      %2257 = vperm.xlu0 %2256, %v2214
      %v2258 = vpop.permute.xlu0 %2257
      %2261 = vset.pattern.permute.xlu0 0
      %2262 = vperm.xlu0 %2261, %v2215
      %v2263 = vpop.permute.xlu0 %2262
      %2266 = vset.pattern.permute.xlu0 0
      %2267 = vperm.xlu0 %2266, %v2216
      %v2268 = vpop.permute.xlu0 %2267
      %2271 = vset.pattern.permute.xlu0 0
      %2272 = vperm.xlu0 %2271, %v2217
      %v2273 = vpop.permute.xlu0 %2272
      %2276 = vset.pattern.permute.xlu0 0
      %2277 = vperm.xlu0 %2276, %v2218
      %v2278 = vpop.permute.xlu0 %2277
      %2281 = vset.pattern.permute.xlu0 0
      %2282 = vperm.xlu0 %2281, %v2219
      %v2283 = vpop.permute.xlu0 %2282
      %2286 = vset.pattern.permute.xlu0 0
      %2287 = vperm.xlu0 %2286, %v2220
      %v2288 = vpop.permute.xlu0 %2287
      %2291 = vset.pattern.permute.xlu0 0
      %2292 = vperm.xlu0 %2291, %v2221
      %v2293 = vpop.permute.xlu0 %2292
      %2296 = vset.pattern.permute.xlu0 0
      %2297 = vperm.xlu0 %2296, %v2222
      %v2298 = vpop.permute.xlu0 %2297
      %2301 = vset.pattern.permute.xlu0 0
      %2302 = vperm.xlu0 %2301, %v2223
      %v2303 = vpop.permute.xlu0 %2302
      %2306 = vset.pattern.permute.xlu0 0
      %2307 = vperm.xlu0 %2306, %v2224
      %v2308 = vpop.permute.xlu0 %2307
      %v2310 = vadd.f32 %v2174, %v2228
      %v2311 = vadd.f32 %v2175, %v2228
      %v2312 = vadd.f32 %v2176, %v2233
      %v2313 = vadd.f32 %v2177, %v2233
      %v2314 = vadd.f32 %v2178, %v2238
      %v2315 = vadd.f32 %v2179, %v2238
      %v2316 = vadd.f32 %v2180, %v2243
      %v2317 = vadd.f32 %v2181, %v2243
      %v2318 = vadd.f32 %v2182, %v2248
      %v2319 = vadd.f32 %v2183, %v2248
      %v2320 = vadd.f32 %v2184, %v2253
      %v2321 = vadd.f32 %v2185, %v2253
      %v2322 = vadd.f32 %v2186, %v2258
      %v2323 = vadd.f32 %v2187, %v2258
      %v2324 = vadd.f32 %v2188, %v2263
      %v2325 = vadd.f32 %v2189, %v2263
      %v2326 = vadd.f32 %v2190, %v2268
      %v2327 = vadd.f32 %v2191, %v2268
      %v2328 = vadd.f32 %v2192, %v2273
      %v2329 = vadd.f32 %v2193, %v2273
      %v2330 = vadd.f32 %v2194, %v2278
      %v2331 = vadd.f32 %v2195, %v2278
      %v2332 = vadd.f32 %v2196, %v2283
      %v2333 = vadd.f32 %v2197, %v2283
      %v2334 = vadd.f32 %v2198, %v2288
      %v2335 = vadd.f32 %v2199, %v2288
      %v2336 = vadd.f32 %v2200, %v2293
      %v2337 = vadd.f32 %v2201, %v2293
      %v2338 = vadd.f32 %v2202, %v2298
      %v2339 = vadd.f32 %v2203, %v2298
      %v2340 = vadd.f32 %v2204, %v2303
      %v2341 = vadd.f32 %v2205, %v2303
      %v2342 = vadd.f32 %v2206, %v2308
      %v2343 = vadd.f32 %v2207, %v2308
      %2344 = vst [vmem:[%s364] sm:$0xff] %v2310
      %2345 = vst.msk [vmem:[%s364 + $0x8] sm:$0xff] %vm1935, %v2311
      %2346 = vst [vmem:[%s364 + $0x10] sm:$0xff] %v2312
      %2347 = vst.msk [vmem:[%s364 + $0x18] sm:$0xff] %vm1935, %v2313
      %2348 = vst [vmem:[%s364 + $0x20] sm:$0xff] %v2314
      %2349 = vst.msk [vmem:[%s364 + $0x28] sm:$0xff] %vm1935, %v2315
      %2350 = vst [vmem:[%s364 + $0x30] sm:$0xff] %v2316
      %2351 = vst.msk [vmem:[%s364 + $0x38] sm:$0xff] %vm1935, %v2317
      %2352 = vst [vmem:[%s364 + $0x40] sm:$0xff] %v2318
      %2353 = vst.msk [vmem:[%s364 + $0x48] sm:$0xff] %vm1935, %v2319
      %2354 = vst [vmem:[%s364 + $0x50] sm:$0xff] %v2320
      %2355 = vst.msk [vmem:[%s364 + $0x58] sm:$0xff] %vm1935, %v2321
      %2356 = vst [vmem:[%s364 + $0x60] sm:$0xff] %v2322
      %2357 = vst.msk [vmem:[%s364 + $0x68] sm:$0xff] %vm1935, %v2323
      %2358 = vst [vmem:[%s364 + $0x70] sm:$0xff] %v2324
      %2359 = vst.msk [vmem:[%s364 + $0x78] sm:$0xff] %vm1935, %v2325
      %2360 = vst [vmem:[%s364 + $0x80] sm:$0xff] %v2326
      %2361 = vst.msk [vmem:[%s364 + $0x88] sm:$0xff] %vm1935, %v2327
      %2362 = vst [vmem:[%s364 + $0x90] sm:$0xff] %v2328
      %2363 = vst.msk [vmem:[%s364 + $0x98] sm:$0xff] %vm1935, %v2329
      %2364 = vst [vmem:[%s364 + $0xa0] sm:$0xff] %v2330
      %2365 = vst.msk [vmem:[%s364 + $0xa8] sm:$0xff] %vm1935, %v2331
      %2366 = vst [vmem:[%s364 + $0xb0] sm:$0xff] %v2332
      %2367 = vst.msk [vmem:[%s364 + $0xb8] sm:$0xff] %vm1935, %v2333
      %2368 = vst [vmem:[%s364 + $0xc0] sm:$0xff] %v2334
      %2369 = vst.msk [vmem:[%s364 + $0xc8] sm:$0xff] %vm1935, %v2335
      %2370 = vst [vmem:[%s364 + $0xd0] sm:$0xff] %v2336
      %2371 = vst.msk [vmem:[%s364 + $0xd8] sm:$0xff] %vm1935, %v2337
      %2372 = vst [vmem:[%s364 + $0xe0] sm:$0xff] %v2338
      %2373 = vst.msk [vmem:[%s364 + $0xe8] sm:$0xff] %vm1935, %v2339
      %2374 = vst [vmem:[%s364 + $0xf0] sm:$0xff] %v2340
      %2375 = vst.msk [vmem:[%s364 + $0xf8] sm:$0xff] %vm1935, %v2341
      %2376 = vst [vmem:[%s364 + $0x100] sm:$0xff] %v2342
      %2377 = vst.msk [vmem:[%s364 + $0x108] sm:$0xff] %vm1935, %v2343
      %s2378 = smul.u32 %s21, 3
      %s2379 = sadd.s32 %s2378, %s22
      %s2380 = smul.u32 17, %s2379
      %p2381 = scmp.lt.s32.totalorder %s2380, 101
      %s2382 = scalar_select %p2381, %s2380, 101
      %s2383 = smul.addr %s2382, 2
      %s2384 = smul.addr %s2383, 8
      %s2385 = scalar_lea.vmem %s6, %s2384
      // Predicated region
      $region49: #{mul_conv_bn_conv_bn.1} parent=43 // pred_check
        %p2386 = pneg %p204
      $region50: #{mul_conv_bn_conv_bn.1} parent=43 // pred_check_branch
        %2388 = sbr.rel (%p2386) target = $region52
      $region51: #{mul_conv_bn_conv_bn.1} parent=43 // pred_region
        %s2389 = smul.u32 %s21, 3
        %s2390 = sadd.s32 %s2389, %s22
        %s2391 = smul.u32 17, %s2390
      $region52: #{mul_conv_bn_conv_bn.1} parent=43 // pred_fallthru
        _
    $region44: #{mul_conv_bn_conv_bn.1} parent=5 // pred_fallthru
      _
    %p2392 = scmp.le.s32.totalorder 2, %s12
    // Predicated region
    $region53: #{mul_conv_bn_conv_bn.1} parent=5 // pred_check
      %p2393 = pneg %p2392
    $region54: #{mul_conv_bn_conv_bn.1} parent=5 // pred_check_branch
      %2395 = sbr.rel (%p2393) target = $region56
    $region55: #{mul_conv_bn_conv_bn.1} parent=5 // pred_region
      %s2396 = ssub.s32 %s12, 2
      // Predicated region
      $region57: #{mul_conv_bn_conv_bn.1} parent=55 // pred_check
        %p2397 = pneg %p210
      $region58: #{mul_conv_bn_conv_bn.1} parent=55 // pred_check_branch
        %2399 = sbr.rel (%p2397) target = $region60
      $region59: #{mul_conv_bn_conv_bn.1} parent=55 // pred_region
        %s2400 = smul.u32 %s23, 3
        %s2401 = sadd.s32 %s2400, %s24
        %s2402 = smul.u32 17, %s2401
        %p2403 = scmp.lt.s32.totalorder %s2402, 101
        %s2404 = scalar_select %p2403, %s2402, 101
        %s2405 = smul.addr %s2404, 2
        %s2406 = smul.addr %s2405, 8
        %s2407 = scalar_lea.vmem %s6, %s2406
      $region60: #{mul_conv_bn_conv_bn.1} parent=55 // pred_fallthru
        _
    $region56: #{mul_conv_bn_conv_bn.1} parent=5 // pred_fallthru
      _
  $region6: #{mul_conv_bn_conv_bn.1} parent=0 // loop_footer
    %s16 = sadd.s32 1, %s12
  $region7: #{mul_conv_bn_conv_bn.1} parent=0 // loop_footer_branch
    %11 = sbr.rel target = $region3
  $region8: #{mul_conv_bn_conv_bn.1} parent=0 // loop_exit
    _

</llo_original>
